<compile_context>
chip_gen: v7x
topology: tpu7x:2x2x1
jax: 0.10.0
libtpu: 0.0.40
codegen_flags: <defaults>
</compile_context>

<pallas_src>
import functools

import jax
import jax.numpy as jnp
from jax.experimental import pallas as pl
from jax.experimental.pallas import tpu as pltpu

_LANE = 128       # vreg lane width (last dim)
_SUBLANE = 8      # vreg sublane width (second-to-last dim)
_MAX_TILE_B = 256 # batch tile for the pipelined 1-D grid
_HIGHEST = jax.lax.Precision.HIGHEST


def _round_up(x, m):
    return ((x + m - 1) // m) * m


def _mlp_kernel(x_ref, w0_ref, b0_ref, wr_ref, br_ref, o_ref, *,
                num_linear, apply_softmax, valid_out):
    """Fused MLP on one [TILE_B, :] batch tile.

    x_ref : [TILE_B, Dp_in]               f32 activations (pipelined over the grid)
    w0_ref: [Dp_in, Dp_out]               first-layer weight (pre-transposed, zero-padded)
    b0_ref: [1, Dp_out]                   first-layer bias (f32)
    wr_ref: [max(L-1,1), Dp_out, Dp_out]  remaining stacked weights (VMEM-resident)
    br_ref: [max(L-1,1), 1, Dp_out]       remaining stacked biases (f32)
    o_ref : [TILE_B, Dp_out]              f32 output (lane-dense)
    """
    cdt = w0_ref.dtype                      # compute dtype for MXU inputs (f32 or bf16)
    h = x_ref[...].astype(cdt)
    y = jnp.dot(h, w0_ref[...], preferred_element_type=jnp.float32,
                precision=_HIGHEST) + b0_ref[...]
    for l in range(num_linear - 1):          # statically unrolled layer loop
        h = jnp.tanh(y).astype(cdt)          # tanh in f32 (EUP), cast only MXU operands
        y = jnp.dot(h, wr_ref[l], preferred_element_type=jnp.float32,
                    precision=_HIGHEST) + br_ref[l]
    if apply_softmax:
        if valid_out < y.shape[-1]:
            # Padded output lanes must not participate in the softmax.
            col = jax.lax.broadcasted_iota(jnp.int32, y.shape, 1)
            y = jnp.where(col < valid_out, y, -jnp.inf)
        y = y - jnp.max(y, axis=-1, keepdims=True)
        e = jnp.exp(y)
        y = e / jnp.sum(e, axis=-1, keepdims=True)   # exact divide (approx recip breaks 1e-5)
    o_ref[...] = y.astype(o_ref.dtype)


def init_task_specific_network(key, input_dim, output_dim, num_layers):
    """Matches the torch module's layer structure (weights returned pre-transposed)."""
    dims = [(input_dim, output_dim)]
    for _ in range(1, num_layers - 1):
        dims.append((output_dim, output_dim))
    if num_layers > 1:
        dims.append((output_dim, output_dim))
    params = []
    for (din, dout) in dims:
        key, kw, kb = jax.random.split(key, 3)
        bound = 1.0 / float(din) ** 0.5      # torch nn.Linear default uniform bound
        w = jax.random.uniform(kw, (dout, din), jnp.float32, -bound, bound)
        b = jax.random.uniform(kb, (dout,), jnp.float32, -bound, bound)
        params.append((w.T, b))
    return params


def pack_params(params, compute_dtype=jnp.float32):
    """Pad layer-0 independently ([dp_in, dp_out]); rest stacked as [L-1, dp_out, dp_out].

    Zero padding is exact: padded K rows contribute 0 and padded output lanes stay 0
    through tanh layers (zero bias). Biases are kept f32 regardless of compute_dtype.
    """
    num_linear = len(params)
    w0_t, b0 = params[0]
    in_dim, first_out = w0_t.shape
    out_dim = params[-1][0].shape[1]
    dp_in = _round_up(in_dim, _SUBLANE)      # contraction dim only needs sublane alignment
    dp_out = _round_up(out_dim, _LANE)       # lane-dense hidden/output width

    w0 = jnp.zeros((dp_in, dp_out), compute_dtype)
    w0 = w0.at[:in_dim, :first_out].set(w0_t.astype(compute_dtype))
    b0p = jnp.zeros((1, dp_out), jnp.float32).at[0, :first_out].set(b0)

    n_rest = max(num_linear - 1, 1)          # dummy slot when num_linear == 1 (never read)
    w_rest = jnp.zeros((n_rest, dp_out, dp_out), compute_dtype)
    b_rest = jnp.zeros((n_rest, 1, dp_out), jnp.float32)
    for l, (w_t, b) in enumerate(params[1:]):
        w_rest = w_rest.at[l, :w_t.shape[0], :w_t.shape[1]].set(w_t.astype(compute_dtype))
        b_rest = b_rest.at[l, 0, :b.shape[0]].set(b)
    return w0, b0p, w_rest, b_rest


@functools.partial(jax.jit,
                   static_argnames=("num_linear", "out_dim", "softmax_on_final_output"))
def task_specific_network_forward(x, w0, b0, w_rest, b_rest, *, num_linear, out_dim,
                                  softmax_on_final_output=False):
    """Forward pass of TaskSpecificNetwork via one fused, batch-gridded Pallas kernel."""
    batch, in_dim = x.shape
    dp_in, dp_out = w0.shape
    x = x.astype(jnp.float32)
    if in_dim != dp_in:                              # only when in_dim isn't 8-aligned
        x = jnp.pad(x, ((0, 0), (0, dp_in - in_dim)))
    tile_b = min(_MAX_TILE_B, _round_up(batch, _SUBLANE))
    bp = _round_up(batch, tile_b)
    if bp != batch:
        x = jnp.pad(x, ((0, bp - batch), (0, 0)))
    grid = (bp // tile_b,)

    kernel = functools.partial(
        _mlp_kernel, num_linear=int(num_linear),
        apply_softmax=bool(softmax_on_final_output), valid_out=int(out_dim))

    nbytes = lambda a: a.size * a.dtype.itemsize
    weight_bytes = nbytes(w0) + nbytes(b0) + nbytes(w_rest) + nbytes(b_rest)
    act_bytes = 2 * 2 * tile_b * (dp_in + dp_out) * 4     # double-buffered in/out tiles
    vmem_limit = int(min(max(weight_bytes + act_bytes + (2 << 20), 32 << 20), 48 << 20))
    # TODO(synk): once weight_bytes outgrows ~48 MiB (v7x budget), stream weights
    # layer-by-layer (memory_space=pl.ANY + make_async_copy double-buffer) instead.

    y_p = pl.pallas_call(
        kernel,
        out_shape=jax.ShapeDtypeStruct((bp, dp_out), jnp.float32),
        grid=grid,
        in_specs=[
            pl.BlockSpec((tile_b, dp_in), lambda i: (i, 0)),   # activations: pipelined
            pl.BlockSpec((dp_in, dp_out), lambda i: (0, 0)),   # weights: constant index,
            pl.BlockSpec((1, dp_out), lambda i: (0, 0)),       #   stay VMEM-resident
            pl.BlockSpec(w_rest.shape, lambda i: (0, 0, 0)),
            pl.BlockSpec(b_rest.shape, lambda i: (0, 0, 0)),
        ],
        out_specs=pl.BlockSpec((tile_b, dp_out), lambda i: (i, 0)),
        compiler_params=pltpu.CompilerParams(
            dimension_semantics=("parallel",),   # batch tiles shard over v7x's 2 TCs
            vmem_limit_bytes=vmem_limit),
    )(x, w0, b0, w_rest, b_rest)

    return y_p[:batch, :out_dim]


def _reference_forward(x, params, softmax_on_final_output):
    h = x.astype(jnp.float32)
    for (w_t, b) in params[:-1]:
        h = jnp.tanh(jnp.dot(h, w_t, precision=_HIGHEST) + b)
    w_t, b = params[-1]
    h = jnp.dot(h, w_t, precision=_HIGHEST) + b
    if softmax_on_final_output:
        h = jax.nn.softmax(h, axis=-1)
    return h


if __name__ == "__main__":
    key = jax.random.PRNGKey(0)
    batch, input_dim, output_dim, num_layers = 8, 32, 32, 3

    key, kx, kp = jax.random.split(key, 3)
    x = jax.random.normal(kx, (batch, input_dim), jnp.float32)
    params = init_task_specific_network(kp, input_dim, output_dim, num_layers)
    num_linear = len(params)

    # --- f32 weights: tight-tolerance checks (softmax and plain-linear final layer) ---
    w0, b0, w_rest, b_rest = pack_params(params, jnp.float32)
    out = jax.block_until_ready(task_specific_network_forward(
        x, w0, b0, w_rest, b_rest, num_linear=num_linear, out_dim=output_dim,
        softmax_on_final_output=True))
    ref = _reference_forward(x, params, True)
    assert out.shape == (batch, output_dim)
    assert jnp.allclose(out, ref, atol=1e-5, rtol=1e-5), "softmax path mismatch"

    out2 = jax.block_until_ready(task_specific_network_forward(
        x, w0, b0, w_rest, b_rest, num_linear=num_linear, out_dim=output_dim,
        softmax_on_final_output=False))
    ref2 = _reference_forward(x, params, False)
    assert jnp.allclose(out2, ref2, atol=1e-5, rtol=1e-5), "linear path mismatch"

    # --- larger batch exercises the pipelined batch grid + batch padding ---
    key, kx2 = jax.random.split(key)
    x_big = jax.random.normal(kx2, (300, input_dim), jnp.float32)
    out3 = jax.block_until_ready(task_specific_network_forward(
        x_big, w0, b0, w_rest, b_rest, num_linear=num_linear, out_dim=output_dim,
        softmax_on_final_output=True))
    ref3 = _reference_forward(x_big, params, True)
    assert out3.shape == (300, output_dim)
    assert jnp.allclose(out3, ref3, atol=1e-5, rtol=1e-5), "batch-grid path mismatch"

    # --- bf16 weights / MXU inputs (v6e/v7x fast path), f32 accumulation: relaxed tol ---
    w0h, b0h, w_resth, b_resth = pack_params(params, jnp.bfloat16)
    out4 = jax.block_until_ready(task_specific_network_forward(
        x, w0h, b0h, w_resth, b_resth, num_linear=num_linear, out_dim=output_dim,
        softmax_on_final_output=True))
    assert jnp.allclose(out4, ref, atol=5e-2, rtol=5e-2), "bf16 path mismatch"

    print("KERNEL_OK")
</pallas_src>

<mosaic_0001>
module attributes {stable_mosaic.version = 11 : i64} {
  func.func @_mlp_kernel(%arg0: i32, %arg1: memref<8x32xf32, #tpu.memory_space<vmem>>, %arg2: memref<32x128xf32, #tpu.memory_space<vmem>>, %arg3: memref<1x128xf32, #tpu.memory_space<vmem>>, %arg4: memref<2x128x128xf32, #tpu.memory_space<vmem>>, %arg5: memref<2x1x128xf32, #tpu.memory_space<vmem>>, %arg6: memref<8x128xf32, #tpu.memory_space<vmem>>) attributes {dimension_semantics = [#tpu.dimension_semantics<parallel>], iteration_bounds = array<i64: 1>, scalar_prefetch = 0 : i64, scratch_operands = 0 : i64, tpu.core_type = #tpu.core_type<tc>, window_params = [{transform_indices = @transform_0, window_bounds = array<i64: 8, 32>}, {pipeline_mode = #tpu.pipeline_mode<synchronous>, transform_indices = @transform_1, window_bounds = array<i64: 32, 128>}, {pipeline_mode = #tpu.pipeline_mode<synchronous>, transform_indices = @transform_2, window_bounds = array<i64: 1, 128>}, {pipeline_mode = #tpu.pipeline_mode<synchronous>, transform_indices = @transform_3, window_bounds = array<i64: 2, 128, 128>}, {pipeline_mode = #tpu.pipeline_mode<synchronous>, transform_indices = @transform_4, window_bounds = array<i64: 2, 1, 128>}, {transform_indices = @transform_5, window_bounds = array<i64: 8, 128>}]} {
    %c0 = arith.constant 0 : index
    %c0_0 = arith.constant 0 : index
    %0 = vector.load %arg1[%c0, %c0_0] : memref<8x32xf32, #tpu.memory_space<vmem>>, vector<8x32xf32>
    %c0_1 = arith.constant 0 : index
    %c0_2 = arith.constant 0 : index
    %1 = vector.load %arg2[%c0_1, %c0_2] : memref<32x128xf32, #tpu.memory_space<vmem>>, vector<32x128xf32>
    %cst = arith.constant dense<0.000000e+00> : vector<8x128xf32>
    %2 = tpu.matmul %0, %1, %cst {dimension_numbers = #tpu.dot_dimension_numbers<[1], [0], [0], [1], [0, 0, 1, 1], [], []>, precision = #tpu.contract_precision<fp32>} : vector<8x32xf32>, vector<32x128xf32>, vector<8x128xf32> -> vector<8x128xf32>
    %c0_3 = arith.constant 0 : index
    %c0_4 = arith.constant 0 : index
    %3 = vector.load %arg3[%c0_3, %c0_4] : memref<1x128xf32, #tpu.memory_space<vmem>>, vector<1x128xf32>
    %4 = vector.broadcast %3 : vector<1x128xf32> to vector<8x128xf32>
    %5 = arith.addf %2, %4 : vector<8x128xf32>
    %6 = math.tanh %5 : vector<8x128xf32>
    %c0_5 = arith.constant 0 : index
    %c0_6 = arith.constant 0 : index
    %c0_7 = arith.constant 0 : index
    %7 = vector.load %arg4[%c0_5, %c0_6, %c0_7] : memref<2x128x128xf32, #tpu.memory_space<vmem>>, vector<1x128x128xf32>
    %8 = vector.shape_cast %7 : vector<1x128x128xf32> to vector<128x128xf32>
    %cst_8 = arith.constant dense<0.000000e+00> : vector<8x128xf32>
    %9 = tpu.matmul %6, %8, %cst_8 {dimension_numbers = #tpu.dot_dimension_numbers<[1], [0], [0], [1], [0, 0, 1, 1], [], []>, precision = #tpu.contract_precision<fp32>} : vector<8x128xf32>, vector<128x128xf32>, vector<8x128xf32> -> vector<8x128xf32>
    %c0_9 = arith.constant 0 : index
    %c0_10 = arith.constant 0 : index
    %c0_11 = arith.constant 0 : index
    %10 = vector.load %arg5[%c0_9, %c0_10, %c0_11] : memref<2x1x128xf32, #tpu.memory_space<vmem>>, vector<1x1x128xf32>
    %11 = vector.shape_cast %10 : vector<1x1x128xf32> to vector<1x128xf32>
    %12 = vector.broadcast %11 : vector<1x128xf32> to vector<8x128xf32>
    %13 = arith.addf %9, %12 : vector<8x128xf32>
    %14 = math.tanh %13 : vector<8x128xf32>
    %c1 = arith.constant 1 : index
    %c0_12 = arith.constant 0 : index
    %c0_13 = arith.constant 0 : index
    %15 = vector.load %arg4[%c1, %c0_12, %c0_13] : memref<2x128x128xf32, #tpu.memory_space<vmem>>, vector<1x128x128xf32>
    %16 = vector.shape_cast %15 : vector<1x128x128xf32> to vector<128x128xf32>
    %cst_14 = arith.constant dense<0.000000e+00> : vector<8x128xf32>
    %17 = tpu.matmul %14, %16, %cst_14 {dimension_numbers = #tpu.dot_dimension_numbers<[1], [0], [0], [1], [0, 0, 1, 1], [], []>, precision = #tpu.contract_precision<fp32>} : vector<8x128xf32>, vector<128x128xf32>, vector<8x128xf32> -> vector<8x128xf32>
    %c1_15 = arith.constant 1 : index
    %c0_16 = arith.constant 0 : index
    %c0_17 = arith.constant 0 : index
    %18 = vector.load %arg5[%c1_15, %c0_16, %c0_17] : memref<2x1x128xf32, #tpu.memory_space<vmem>>, vector<1x1x128xf32>
    %19 = vector.shape_cast %18 : vector<1x1x128xf32> to vector<1x128xf32>
    %20 = vector.broadcast %19 : vector<1x128xf32> to vector<8x128xf32>
    %21 = arith.addf %17, %20 : vector<8x128xf32>
    %22 = tpu.iota {dimensions = array<i32: 1>} : vector<8x128xi32>
    %c32_i32 = arith.constant 32 : i32
    %23 = vector.broadcast %c32_i32 : i32 to vector<8x128xi32>
    %24 = arith.cmpi slt, %22, %23 : vector<8x128xi32>
    %cst_18 = arith.constant 0xFF800000 : f32
    %25 = vector.broadcast %cst_18 : f32 to vector<8x128xf32>
    %26 = arith.select %24, %21, %25 : vector<8x128xi1>, vector<8x128xf32>
    %cst_19 = arith.constant dense<0xFF800000> : vector<8xf32>
    %27 = vector.multi_reduction <maximumf>, %26, %cst_19 [1] : vector<8x128xf32> to vector<8xf32>
    %28 = vector.shape_cast %27 : vector<8xf32> to vector<8x1xf32>
    %29 = vector.broadcast %28 : vector<8x1xf32> to vector<8x128xf32>
    %30 = arith.subf %26, %29 : vector<8x128xf32>
    %31 = math.exp %30 : vector<8x128xf32>
    %cst_20 = arith.constant dense<0.000000e+00> : vector<8xf32>
    %32 = vector.multi_reduction <add>, %31, %cst_20 [1] : vector<8x128xf32> to vector<8xf32>
    %33 = vector.shape_cast %32 : vector<8xf32> to vector<8x1xf32>
    %34 = vector.broadcast %33 : vector<8x1xf32> to vector<8x128xf32>
    %35 = arith.divf %31, %34 : vector<8x128xf32>
    %c0_21 = arith.constant 0 : index
    %c0_22 = arith.constant 0 : index
    %36 = vector.load %arg6[%c0_21, %c0_22] : memref<8x128xf32, #tpu.memory_space<vmem>>, vector<8x128xf32>
    tpu.vector_store %arg6[%c0_21, %c0_22], %35 {strides = array<i32>} : memref<8x128xf32, #tpu.memory_space<vmem>>, vector<8x128xf32>,
    return
  }
  func.func @transform_0(%arg0: i32) -> (i32, i32) {
    %c0_i32 = arith.constant 0 : i32
    %c0_i32_0 = arith.constant 0 : i32
    return %arg0, %c0_i32 : i32, i32
  }
  func.func @transform_1(%arg0: i32) -> (i32, i32) {
    %c0_i32 = arith.constant 0 : i32
    %c0_i32_0 = arith.constant 0 : i32
    %c0_i32_1 = arith.constant 0 : i32
    return %c0_i32, %c0_i32_0 : i32, i32
  }
  func.func @transform_2(%arg0: i32) -> (i32, i32) {
    %c0_i32 = arith.constant 0 : i32
    %c0_i32_0 = arith.constant 0 : i32
    %c0_i32_1 = arith.constant 0 : i32
    return %c0_i32, %c0_i32_0 : i32, i32
  }
  func.func @transform_3(%arg0: i32) -> (i32, i32, i32) {
    %c0_i32 = arith.constant 0 : i32
    %c0_i32_0 = arith.constant 0 : i32
    %c0_i32_1 = arith.constant 0 : i32
    %c0_i32_2 = arith.constant 0 : i32
    return %c0_i32, %c0_i32_0, %c0_i32_1 : i32, i32, i32
  }
  func.func @transform_4(%arg0: i32) -> (i32, i32, i32) {
    %c0_i32 = arith.constant 0 : i32
    %c0_i32_0 = arith.constant 0 : i32
    %c0_i32_1 = arith.constant 0 : i32
    %c0_i32_2 = arith.constant 0 : i32
    return %c0_i32, %c0_i32_0, %c0_i32_1 : i32, i32, i32
  }
  func.func @transform_5(%arg0: i32) -> (i32, i32) {
    %c0_i32 = arith.constant 0 : i32
    %c0_i32_0 = arith.constant 0 : i32
    return %arg0, %c0_i32 : i32, i32
  }
}

</mosaic_0001>

<llo_original>
// kernel: task_specific_network_forward.1
$region0: #{task_specific_network_forward.1}
  #allocation0 [shape = 'u32[]', space=smem, size = 0x4, offset = 0x4, fixed_abs, tag = 'smem constant byte address 0x4 - core index']
  #allocation1 [shape = 'u32[144,128]{1,0:T(1,128)}', space=vmem, size = 0x12000, scoped, tag = 'internal scratch']
  %s0 = inlined_call_operand.hbm [shape: f32[8,32], index: 0, kind: input, shape index: {}]
  %s1 = inlined_call_operand.hbm [shape: f32[32,128], index: 1, kind: input, shape index: {}]
  %s2 = inlined_call_operand.vmem [shape: f32[1,128], index: 2, kind: input, shape index: {}]
  %s3 = inlined_call_operand.hbm [shape: f32[2,128,128], index: 3, kind: input, shape index: {}]
  %s4 = inlined_call_operand.vmem [shape: f32[2,1,128], index: 4, kind: input, shape index: {}]
  %s5 = inlined_call_operand.hbm [shape: f32[8,128], index: 5, kind: output, shape index: {}]
  %s6 = sld [smem:[#allocation0]]
  $region42: #{task_specific_network_forward.1} parent=0
    _
  %s8 = ssub.s32 1, %s6
  %s9 = scalar_select 0, %s8, %s6
  $region1: #{task_specific_network_forward.1} parent=0
    #allocation2 [shape = 'u8[4096]{0}', space=vmem, size = 0x1000, scoped, tag = 'input window, operand 0, single buffered']
    #allocation3 [shape = 's32[1]{0}', space=sflag, size = 0x4, scoped, tag = 'scoped memory for task_specific_network_forward.1']
    #allocation4 [shape = 's32[1]{0}', space=sflag, size = 0x4, scoped, tag = 'scoped memory for task_specific_network_forward.1']
    #allocation5 [shape = 'u8[16384]{0}', space=vmem, size = 0x4000, scoped, tag = 'input window, operand 1, single buffered']
    #allocation6 [shape = 's32[1]{0}', space=sflag, size = 0x4, scoped, tag = 'scoped memory for task_specific_network_forward.1']
    #allocation7 [shape = 'u8[131072]{0}', space=vmem, size = 0x20000, scoped, tag = 'input window, operand 3, single buffered']
    #allocation8 [shape = 'u8[4096]{0}', space=vmem, size = 0x1000, scoped, tag = 'output window, operand 0, single buffered']
    %10 = vsyncpa [#allocation3], 0
    %11 = vsyncpa [#allocation6], 0
    %12 = vsyncpa [#allocation4], 0
    // Predicated region
    $region2: #{task_specific_network_forward.1} parent=1 // pred_check
      _
    $region3: #{task_specific_network_forward.1} parent=1 // pred_check_branch
      %14 = sbr.rel (0) target = $region5
    $region4: #{task_specific_network_forward.1} parent=1 // pred_region
      %s16 = ssub.s32 128, 128
      %17 = vsyncadd [#allocation3], %s16
      %s19 = sshll.u32 [#allocation2], 4
      %s20 = int_to_ptr.vmem [resolvable:$true] %s19
      %22 = dma.hbm_to_vmem [thread:$0]  %s0, 128, %s20, [#allocation3]
    $region5: #{task_specific_network_forward.1} parent=1 // pred_fallthru
      _
    // Predicated region
    $region6: #{task_specific_network_forward.1} parent=1 // pred_check
      _
    $region7: #{task_specific_network_forward.1} parent=1 // pred_check_branch
      %24 = sbr.rel (0) target = $region9
    $region8: #{task_specific_network_forward.1} parent=1 // pred_region
      %s26 = ssub.s32 512, 512
      %27 = vsyncadd [#allocation6], %s26
      %s28 = sshll.u32 [#allocation5], 4
      %s29 = int_to_ptr.vmem [resolvable:$true] %s28
      %34 = dma.hbm_to_vmem [thread:$0]  %s1, 512, %s29, [#allocation6], 128, 128, 8
    $region9: #{task_specific_network_forward.1} parent=1 // pred_fallthru
      _
    // Predicated region
    $region10: #{task_specific_network_forward.1} parent=1 // pred_check
      _
    $region11: #{task_specific_network_forward.1} parent=1 // pred_check_branch
      %36 = sbr.rel (0) target = $region13
    $region12: #{task_specific_network_forward.1} parent=1 // pred_region
      _
    $region13: #{task_specific_network_forward.1} parent=1 // pred_fallthru
      _
    // Predicated region
    $region14: #{task_specific_network_forward.1} parent=1 // pred_check
      _
    $region15: #{task_specific_network_forward.1} parent=1 // pred_check_branch
      %38 = sbr.rel (0) target = $region17
    $region16: #{task_specific_network_forward.1} parent=1 // pred_region
      %s40 = ssub.s32 4096, 4096
      %41 = vsyncadd [#allocation6], %s40
      %s42 = sshll.u32 [#allocation7], 4
      %s43 = int_to_ptr.vmem [resolvable:$true] %s42
      %48 = dma.hbm_to_vmem [thread:$0]  %s3, 4096, %s43, [#allocation6], 128, 128, 8
    $region17: #{task_specific_network_forward.1} parent=1 // pred_fallthru
      _
    // Predicated region
    $region18: #{task_specific_network_forward.1} parent=1 // pred_check
      _
    $region19: #{task_specific_network_forward.1} parent=1 // pred_check_branch
      %50 = sbr.rel (0) target = $region21
    $region20: #{task_specific_network_forward.1} parent=1 // pred_region
      _
    $region21: #{task_specific_network_forward.1} parent=1 // pred_fallthru
      _
    // Predicated region
    $region22: #{task_specific_network_forward.1} parent=1 // pred_check
      _
    $region23: #{task_specific_network_forward.1} parent=1 // pred_check_branch
      %52 = sbr.rel (0) target = $region25
    $region24: #{task_specific_network_forward.1} parent=1 // pred_region
      %53 = dma.done [#allocation3], 128
    $region25: #{task_specific_network_forward.1} parent=1 // pred_fallthru
      _
    // Predicated region
    $region26: #{task_specific_network_forward.1} parent=1 // pred_check
      _
    $region27: #{task_specific_network_forward.1} parent=1 // pred_check_branch
      %55 = sbr.rel (0) target = $region29
    $region28: #{task_specific_network_forward.1} parent=1 // pred_region
      %56 = dma.done [#allocation6], 512
    $region29: #{task_specific_network_forward.1} parent=1 // pred_fallthru
      _
    // Predicated region
    $region30: #{task_specific_network_forward.1} parent=1 // pred_check
      _
    $region31: #{task_specific_network_forward.1} parent=1 // pred_check_branch
      %58 = sbr.rel (0) target = $region33
    $region32: #{task_specific_network_forward.1} parent=1 // pred_region
      %59 = dma.done [#allocation6], 4096
    $region33: #{task_specific_network_forward.1} parent=1 // pred_fallthru
      _
    %v60 = vld [vmem:[#allocation2] sm:$0xff]
    %v61 = vld [vmem:[#allocation5] sm:$0xff]
    %v62 = vld [vmem:[#allocation5 + $0x8] sm:$0xff]
    %v63 = vld [vmem:[#allocation5 + $0x10] sm:$0xff]
    %v64 = vld [vmem:[#allocation5 + $0x18] sm:$0xff]
    %v65 = vld [vmem:[%s2] sm:$0x1]
    %v67 = vlaneseq
    %v68 = vshrl.u32 %v67, 7
    %v69 = vsub.s32 0, %v68
    %v70 = vrot.slane %v65, %v69
    %vm72 = vcmask 261120
    %v74 = vsel %vm72, %v60, 0
    %76 = vmatprep.subr.mxu0 0.0
    %v77 = vand.u32 %v61, 4294901760
    %78 = vmatpush1.msra.mxu0 %v77
    %79 = vmatprep.subr.mxu0 0.0
    %v80 = vand.u32 %v62, 4294901760
    %81 = vmatpush1.msra.mxu0 %v80
    %82 = vmatprep.subr.mxu0 0.0
    %v83 = vand.u32 %v63, 4294901760
    %84 = vmatpush1.msra.mxu0 %v83
    %85 = vmatprep.subr.mxu0 0.0
    %v86 = vand.u32 %v64, 4294901760
    %87 = vmatpush1.msra.mxu0 %v86
    %88 = vmatprep.subr.mxu0 0.0
    %89 = vmatpush1.msra.mxu0 0.0
    %90 = vmatprep.subr.mxu0 0.0
    %91 = vmatpush1.msra.mxu0 0.0
    %92 = vmatprep.subr.mxu0 0.0
    %93 = vmatpush1.msra.mxu0 0.0
    %94 = vmatprep.subr.mxu0 0.0
    %95 = vmatpush1.msra.mxu0 0.0
    %96 = vmatprep.subr.mxu0 0.0
    %97 = vmatpush1.msra.mxu0 0.0
    %98 = vmatprep.subr.mxu0 0.0
    %99 = vmatpush1.msra.mxu0 0.0
    %100 = vmatprep.subr.mxu0 0.0
    %101 = vmatpush1.msra.mxu0 0.0
    %102 = vmatprep.subr.mxu0 0.0
    %103 = vmatpush1.msra.mxu0 0.0
    %104 = vmatprep.subr.mxu0 0.0
    %105 = vmatpush1.msra.mxu0 0.0
    %106 = vmatprep.subr.mxu0 0.0
    %107 = vmatpush1.msra.mxu0 0.0
    %108 = vmatprep.subr.mxu0 0.0
    %109 = vmatpush1.msra.mxu0 0.0
    %110 = vmatprep.subr.mxu0 0.0
    %111 = vmatpush1.msra.mxu0 0.0
    %112 = vmatprep.subr.mxu0 0.0
    %113 = vmatpush1.msra.mxu0 0.0
    %114 = vmatprep.subr.mxu0 0.0
    %115 = vmatpush1.msra.mxu0 0.0
    %116 = vmatprep.subr.mxu0 0.0
    %117 = vmatpush1.msra.mxu0 0.0
    %118 = vmatprep.subr.mxu0 0.0
    %119 = vmatpush1.msra.mxu0 0.0
    %120 = vmatprep.subr.mxu0 0.0
    %121 = vmatpush1.msra.mxu0 0.0
    %122 = vmatprep.subr.mxu0 0.0
    %123 = vmatpush1.msra.mxu0 0.0
    %124 = vmatprep.subr.mxu0 0.0
    %125 = vmatpush1.msra.mxu0 0.0
    %126 = vmatprep.subr.mxu0 0.0
    %127 = vmatpush1.msra.mxu0 0.0
    %128 = vmatprep.subr.mxu0 0.0
    %129 = vmatpush1.msra.mxu0 0.0
    %130 = vmatprep.subr.mxu0 0.0
    %131 = vmatpush1.msra.mxu0 0.0
    %132 = vmatprep.subr.mxu0 0.0
    %133 = vmatpush1.msra.mxu0 0.0
    %134 = vmatprep.subr.mxu0 0.0
    %135 = vmatpush1.msra.mxu0 0.0
    %136 = vmatprep.subr.mxu0 0.0
    %137 = vmatpush1.msra.mxu0 0.0
    %138 = vmatprep.subr.mxu0 0.0
    %139 = vmatpush1.msra.mxu0 0.0
    %140 = vmatprep.subr.mxu0 0.0
    %141 = vmatpush1.msra.mxu0 0.0
    %142 = vmatprep.subr.mxu0 0.0
    %143 = vmatpush1.msra.mxu0 0.0
    %144 = vmatprep.mubr.f32.mxu0 0.0
    %v145 = vand.u32 %v74, 4294901760
    %v146 = vsub.f32 %v74, %v145
    %v147 = vand.u32 %v146, 4294901760
    %v148 = vsub.f32 %v146, %v147
    %v149 = vand.u32 %v148, 4294901760
    %150 = vmatmul.mubr.f32.gmra.mrb[0].mxu0 %v149
    %v151 = vpop.f32.mrb[0].mxu0
    %v152 = vadd.f32 %v70, %v151
    %v153 = vpop.f32.mrb[0].mxu0
    %154 = vdwg.mxu0
    %155 = vmatprep.subr.mxu0 0.0
    %v156 = vand.u32 %v61, 4294901760
    %v157 = vsub.f32 %v61, %v156
    %v158 = vand.u32 %v157, 4294901760
    %v159 = vsub.f32 %v157, %v158
    %v160 = vand.u32 %v159, 4294901760
    %161 = vmatpush1.msra.mxu0 %v160
    %162 = vmatprep.subr.mxu0 0.0
    %v163 = vand.u32 %v62, 4294901760
    %v164 = vsub.f32 %v62, %v163
    %v165 = vand.u32 %v164, 4294901760
    %v166 = vsub.f32 %v164, %v165
    %v167 = vand.u32 %v166, 4294901760
    %168 = vmatpush1.msra.mxu0 %v167
    %169 = vmatprep.subr.mxu0 0.0
    %v170 = vand.u32 %v63, 4294901760
    %v171 = vsub.f32 %v63, %v170
    %v172 = vand.u32 %v171, 4294901760
    %v173 = vsub.f32 %v171, %v172
    %v174 = vand.u32 %v173, 4294901760
    %175 = vmatpush1.msra.mxu0 %v174
    %176 = vmatprep.subr.mxu0 0.0
    %v177 = vand.u32 %v64, 4294901760
    %v178 = vsub.f32 %v64, %v177
    %v179 = vand.u32 %v178, 4294901760
    %v180 = vsub.f32 %v178, %v179
    %v181 = vand.u32 %v180, 4294901760
    %182 = vmatpush1.msra.mxu0 %v181
    %183 = vmatprep.subr.mxu0 0.0
    %184 = vmatpush1.msra.mxu0 0.0
    %185 = vmatprep.subr.mxu0 0.0
    %186 = vmatpush1.msra.mxu0 0.0
    %187 = vmatprep.subr.mxu0 0.0
    %188 = vmatpush1.msra.mxu0 0.0
    %189 = vmatprep.subr.mxu0 0.0
    %190 = vmatpush1.msra.mxu0 0.0
    %191 = vmatprep.subr.mxu0 0.0
    %192 = vmatpush1.msra.mxu0 0.0
    %193 = vmatprep.subr.mxu0 0.0
    %194 = vmatpush1.msra.mxu0 0.0
    %195 = vmatprep.subr.mxu0 0.0
    %196 = vmatpush1.msra.mxu0 0.0
    %197 = vmatprep.subr.mxu0 0.0
    %198 = vmatpush1.msra.mxu0 0.0
    %199 = vmatprep.subr.mxu0 0.0
    %200 = vmatpush1.msra.mxu0 0.0
    %201 = vmatprep.subr.mxu0 0.0
    %202 = vmatpush1.msra.mxu0 0.0
    %203 = vmatprep.subr.mxu0 0.0
    %204 = vmatpush1.msra.mxu0 0.0
    %205 = vmatprep.subr.mxu0 0.0
    %206 = vmatpush1.msra.mxu0 0.0
    %207 = vmatprep.subr.mxu0 0.0
    %208 = vmatpush1.msra.mxu0 0.0
    %209 = vmatprep.subr.mxu0 0.0
    %210 = vmatpush1.msra.mxu0 0.0
    %211 = vmatprep.subr.mxu0 0.0
    %212 = vmatpush1.msra.mxu0 0.0
    %213 = vmatprep.subr.mxu0 0.0
    %214 = vmatpush1.msra.mxu0 0.0
    %215 = vmatprep.subr.mxu0 0.0
    %216 = vmatpush1.msra.mxu0 0.0
    %217 = vmatprep.subr.mxu0 0.0
    %218 = vmatpush1.msra.mxu0 0.0
    %219 = vmatprep.subr.mxu0 0.0
    %220 = vmatpush1.msra.mxu0 0.0
    %221 = vmatprep.subr.mxu0 0.0
    %222 = vmatpush1.msra.mxu0 0.0
    %223 = vmatprep.subr.mxu0 0.0
    %224 = vmatpush1.msra.mxu0 0.0
    %225 = vmatprep.subr.mxu0 0.0
    %226 = vmatpush1.msra.mxu0 0.0
    %227 = vmatprep.subr.mxu0 0.0
    %228 = vmatpush1.msra.mxu0 0.0
    %229 = vmatprep.subr.mxu0 0.0
    %230 = vmatpush1.msra.mxu0 0.0
    %231 = vmatprep.subr.mxu0 0.0
    %232 = vmatpush1.msra.mxu0 0.0
    %233 = vmatprep.subr.mxu0 0.0
    %234 = vmatpush1.msra.mxu0 0.0
    %235 = vmatprep.subr.mxu0 0.0
    %236 = vmatpush1.msra.mxu0 0.0
    %237 = vmatprep.subr.mxu0 0.0
    %238 = vmatpush1.msra.mxu0 0.0
    %239 = vmatprep.mubr.f32.mxu0 0.0
    %v240 = vand.u32 %v74, 4294901760
    %241 = vmatmul.mubr.f32.gmra.mrb[0].mxu0 %v240
    %v242 = vpop.f32.mrb[0].mxu0
    %v243 = vadd.f32 %v152, %v242
    %v244 = vpop.f32.mrb[0].mxu0
    %245 = vdwg.mxu0
    %246 = vmatprep.subr.mxu0 0.0
    %v247 = vand.u32 %v61, 4294901760
    %v248 = vsub.f32 %v61, %v247
    %249 = vmatpush1.msra.mxu0 %v248
    %250 = vmatprep.subr.mxu0 0.0
    %v251 = vand.u32 %v62, 4294901760
    %v252 = vsub.f32 %v62, %v251
    %253 = vmatpush1.msra.mxu0 %v252
    %254 = vmatprep.subr.mxu0 0.0
    %v255 = vand.u32 %v63, 4294901760
    %v256 = vsub.f32 %v63, %v255
    %257 = vmatpush1.msra.mxu0 %v256
    %258 = vmatprep.subr.mxu0 0.0
    %v259 = vand.u32 %v64, 4294901760
    %v260 = vsub.f32 %v64, %v259
    %261 = vmatpush1.msra.mxu0 %v260
    %262 = vmatprep.subr.mxu0 0.0
    %263 = vmatpush1.msra.mxu0 0.0
    %264 = vmatprep.subr.mxu0 0.0
    %265 = vmatpush1.msra.mxu0 0.0
    %266 = vmatprep.subr.mxu0 0.0
    %267 = vmatpush1.msra.mxu0 0.0
    %268 = vmatprep.subr.mxu0 0.0
    %269 = vmatpush1.msra.mxu0 0.0
    %270 = vmatprep.subr.mxu0 0.0
    %271 = vmatpush1.msra.mxu0 0.0
    %272 = vmatprep.subr.mxu0 0.0
    %273 = vmatpush1.msra.mxu0 0.0
    %274 = vmatprep.subr.mxu0 0.0
    %275 = vmatpush1.msra.mxu0 0.0
    %276 = vmatprep.subr.mxu0 0.0
    %277 = vmatpush1.msra.mxu0 0.0
    %278 = vmatprep.subr.mxu0 0.0
    %279 = vmatpush1.msra.mxu0 0.0
    %280 = vmatprep.subr.mxu0 0.0
    %281 = vmatpush1.msra.mxu0 0.0
    %282 = vmatprep.subr.mxu0 0.0
    %283 = vmatpush1.msra.mxu0 0.0
    %284 = vmatprep.subr.mxu0 0.0
    %285 = vmatpush1.msra.mxu0 0.0
    %286 = vmatprep.subr.mxu0 0.0
    %287 = vmatpush1.msra.mxu0 0.0
    %288 = vmatprep.subr.mxu0 0.0
    %289 = vmatpush1.msra.mxu0 0.0
    %290 = vmatprep.subr.mxu0 0.0
    %291 = vmatpush1.msra.mxu0 0.0
    %292 = vmatprep.subr.mxu0 0.0
    %293 = vmatpush1.msra.mxu0 0.0
    %294 = vmatprep.subr.mxu0 0.0
    %295 = vmatpush1.msra.mxu0 0.0
    %296 = vmatprep.subr.mxu0 0.0
    %297 = vmatpush1.msra.mxu0 0.0
    %298 = vmatprep.subr.mxu0 0.0
    %299 = vmatpush1.msra.mxu0 0.0
    %300 = vmatprep.subr.mxu0 0.0
    %301 = vmatpush1.msra.mxu0 0.0
    %302 = vmatprep.subr.mxu0 0.0
    %303 = vmatpush1.msra.mxu0 0.0
    %304 = vmatprep.subr.mxu0 0.0
    %305 = vmatpush1.msra.mxu0 0.0
    %306 = vmatprep.subr.mxu0 0.0
    %307 = vmatpush1.msra.mxu0 0.0
    %308 = vmatprep.subr.mxu0 0.0
    %309 = vmatpush1.msra.mxu0 0.0
    %310 = vmatprep.subr.mxu0 0.0
    %311 = vmatpush1.msra.mxu0 0.0
    %312 = vmatprep.subr.mxu0 0.0
    %313 = vmatpush1.msra.mxu0 0.0
    %314 = vmatprep.subr.mxu0 0.0
    %315 = vmatpush1.msra.mxu0 0.0
    %316 = vmatprep.subr.mxu0 0.0
    %317 = vmatpush1.msra.mxu0 0.0
    %318 = vmatprep.mubr.f32.mxu0 0.0
    %v319 = vand.u32 %v74, 4294901760
    %v320 = vsub.f32 %v74, %v319
    %321 = vmatmul.mubr.f32.gmra.mrb[0].mxu0 %v320
    %v322 = vpop.f32.mrb[0].mxu0
    %v323 = vadd.f32 %v243, %v322
    %v324 = vpop.f32.mrb[0].mxu0
    %325 = vdwg.mxu0
    %326 = vmatprep.subr.mxu0 0.0
    %v327 = vand.u32 %v61, 4294901760
    %328 = vmatpush1.msra.mxu0 %v327
    %329 = vmatprep.subr.mxu0 0.0
    %v330 = vand.u32 %v62, 4294901760
    %331 = vmatpush1.msra.mxu0 %v330
    %332 = vmatprep.subr.mxu0 0.0
    %v333 = vand.u32 %v63, 4294901760
    %334 = vmatpush1.msra.mxu0 %v333
    %335 = vmatprep.subr.mxu0 0.0
    %v336 = vand.u32 %v64, 4294901760
    %337 = vmatpush1.msra.mxu0 %v336
    %338 = vmatprep.subr.mxu0 0.0
    %339 = vmatpush1.msra.mxu0 0.0
    %340 = vmatprep.subr.mxu0 0.0
    %341 = vmatpush1.msra.mxu0 0.0
    %342 = vmatprep.subr.mxu0 0.0
    %343 = vmatpush1.msra.mxu0 0.0
    %344 = vmatprep.subr.mxu0 0.0
    %345 = vmatpush1.msra.mxu0 0.0
    %346 = vmatprep.subr.mxu0 0.0
    %347 = vmatpush1.msra.mxu0 0.0
    %348 = vmatprep.subr.mxu0 0.0
    %349 = vmatpush1.msra.mxu0 0.0
    %350 = vmatprep.subr.mxu0 0.0
    %351 = vmatpush1.msra.mxu0 0.0
    %352 = vmatprep.subr.mxu0 0.0
    %353 = vmatpush1.msra.mxu0 0.0
    %354 = vmatprep.subr.mxu0 0.0
    %355 = vmatpush1.msra.mxu0 0.0
    %356 = vmatprep.subr.mxu0 0.0
    %357 = vmatpush1.msra.mxu0 0.0
    %358 = vmatprep.subr.mxu0 0.0
    %359 = vmatpush1.msra.mxu0 0.0
    %360 = vmatprep.subr.mxu0 0.0
    %361 = vmatpush1.msra.mxu0 0.0
    %362 = vmatprep.subr.mxu0 0.0
    %363 = vmatpush1.msra.mxu0 0.0
    %364 = vmatprep.subr.mxu0 0.0
    %365 = vmatpush1.msra.mxu0 0.0
    %366 = vmatprep.subr.mxu0 0.0
    %367 = vmatpush1.msra.mxu0 0.0
    %368 = vmatprep.subr.mxu0 0.0
    %369 = vmatpush1.msra.mxu0 0.0
    %370 = vmatprep.subr.mxu0 0.0
    %371 = vmatpush1.msra.mxu0 0.0
    %372 = vmatprep.subr.mxu0 0.0
    %373 = vmatpush1.msra.mxu0 0.0
    %374 = vmatprep.subr.mxu0 0.0
    %375 = vmatpush1.msra.mxu0 0.0
    %376 = vmatprep.subr.mxu0 0.0
    %377 = vmatpush1.msra.mxu0 0.0
    %378 = vmatprep.subr.mxu0 0.0
    %379 = vmatpush1.msra.mxu0 0.0
    %380 = vmatprep.subr.mxu0 0.0
    %381 = vmatpush1.msra.mxu0 0.0
    %382 = vmatprep.subr.mxu0 0.0
    %383 = vmatpush1.msra.mxu0 0.0
    %384 = vmatprep.subr.mxu0 0.0
    %385 = vmatpush1.msra.mxu0 0.0
    %386 = vmatprep.subr.mxu0 0.0
    %387 = vmatpush1.msra.mxu0 0.0
    %388 = vmatprep.subr.mxu0 0.0
    %389 = vmatpush1.msra.mxu0 0.0
    %390 = vmatprep.subr.mxu0 0.0
    %391 = vmatpush1.msra.mxu0 0.0
    %392 = vmatprep.subr.mxu0 0.0
    %393 = vmatpush1.msra.mxu0 0.0
    %394 = vmatprep.mubr.f32.mxu0 0.0
    %v395 = vand.u32 %v74, 4294901760
    %v396 = vsub.f32 %v74, %v395
    %v397 = vand.u32 %v396, 4294901760
    %398 = vmatmul.mubr.f32.gmra.mrb[0].mxu0 %v397
    %v399 = vpop.f32.mrb[0].mxu0
    %v400 = vadd.f32 %v323, %v399
    %v401 = vpop.f32.mrb[0].mxu0
    %402 = vdwg.mxu0
    %403 = vmatprep.subr.mxu0 0.0
    %v404 = vand.u32 %v61, 4294901760
    %v405 = vsub.f32 %v61, %v404
    %v406 = vand.u32 %v405, 4294901760
    %407 = vmatpush1.msra.mxu0 %v406
    %408 = vmatprep.subr.mxu0 0.0
    %v409 = vand.u32 %v62, 4294901760
    %v410 = vsub.f32 %v62, %v409
    %v411 = vand.u32 %v410, 4294901760
    %412 = vmatpush1.msra.mxu0 %v411
    %413 = vmatprep.subr.mxu0 0.0
    %v414 = vand.u32 %v63, 4294901760
    %v415 = vsub.f32 %v63, %v414
    %v416 = vand.u32 %v415, 4294901760
    %417 = vmatpush1.msra.mxu0 %v416
    %418 = vmatprep.subr.mxu0 0.0
    %v419 = vand.u32 %v64, 4294901760
    %v420 = vsub.f32 %v64, %v419
    %v421 = vand.u32 %v420, 4294901760
    %422 = vmatpush1.msra.mxu0 %v421
    %423 = vmatprep.subr.mxu0 0.0
    %424 = vmatpush1.msra.mxu0 0.0
    %425 = vmatprep.subr.mxu0 0.0
    %426 = vmatpush1.msra.mxu0 0.0
    %427 = vmatprep.subr.mxu0 0.0
    %428 = vmatpush1.msra.mxu0 0.0
    %429 = vmatprep.subr.mxu0 0.0
    %430 = vmatpush1.msra.mxu0 0.0
    %431 = vmatprep.subr.mxu0 0.0
    %432 = vmatpush1.msra.mxu0 0.0
    %433 = vmatprep.subr.mxu0 0.0
    %434 = vmatpush1.msra.mxu0 0.0
    %435 = vmatprep.subr.mxu0 0.0
    %436 = vmatpush1.msra.mxu0 0.0
    %437 = vmatprep.subr.mxu0 0.0
    %438 = vmatpush1.msra.mxu0 0.0
    %439 = vmatprep.subr.mxu0 0.0
    %440 = vmatpush1.msra.mxu0 0.0
    %441 = vmatprep.subr.mxu0 0.0
    %442 = vmatpush1.msra.mxu0 0.0
    %443 = vmatprep.subr.mxu0 0.0
    %444 = vmatpush1.msra.mxu0 0.0
    %445 = vmatprep.subr.mxu0 0.0
    %446 = vmatpush1.msra.mxu0 0.0
    %447 = vmatprep.subr.mxu0 0.0
    %448 = vmatpush1.msra.mxu0 0.0
    %449 = vmatprep.subr.mxu0 0.0
    %450 = vmatpush1.msra.mxu0 0.0
    %451 = vmatprep.subr.mxu0 0.0
    %452 = vmatpush1.msra.mxu0 0.0
    %453 = vmatprep.subr.mxu0 0.0
    %454 = vmatpush1.msra.mxu0 0.0
    %455 = vmatprep.subr.mxu0 0.0
    %456 = vmatpush1.msra.mxu0 0.0
    %457 = vmatprep.subr.mxu0 0.0
    %458 = vmatpush1.msra.mxu0 0.0
    %459 = vmatprep.subr.mxu0 0.0
    %460 = vmatpush1.msra.mxu0 0.0
    %461 = vmatprep.subr.mxu0 0.0
    %462 = vmatpush1.msra.mxu0 0.0
    %463 = vmatprep.subr.mxu0 0.0
    %464 = vmatpush1.msra.mxu0 0.0
    %465 = vmatprep.subr.mxu0 0.0
    %466 = vmatpush1.msra.mxu0 0.0
    %467 = vmatprep.subr.mxu0 0.0
    %468 = vmatpush1.msra.mxu0 0.0
    %469 = vmatprep.subr.mxu0 0.0
    %470 = vmatpush1.msra.mxu0 0.0
    %471 = vmatprep.subr.mxu0 0.0
    %472 = vmatpush1.msra.mxu0 0.0
    %473 = vmatprep.subr.mxu0 0.0
    %474 = vmatpush1.msra.mxu0 0.0
    %475 = vmatprep.subr.mxu0 0.0
    %476 = vmatpush1.msra.mxu0 0.0
    %477 = vmatprep.subr.mxu0 0.0
    %478 = vmatpush1.msra.mxu0 0.0
    %479 = vmatprep.mubr.f32.mxu0 0.0
    %v480 = vand.u32 %v74, 4294901760
    %481 = vmatmul.mubr.f32.gmra.mrb[0].mxu0 %v480
    %v482 = vpop.f32.mrb[0].mxu0
    %v483 = vadd.f32 %v400, %v482
    %v484 = vpop.f32.mrb[0].mxu0
    %485 = vdwg.mxu0
    %486 = vmatprep.subr.mxu0 0.0
    %v487 = vand.u32 %v61, 4294901760
    %488 = vmatpush1.msra.mxu0 %v487
    %489 = vmatprep.subr.mxu0 0.0
    %v490 = vand.u32 %v62, 4294901760
    %491 = vmatpush1.msra.mxu0 %v490
    %492 = vmatprep.subr.mxu0 0.0
    %v493 = vand.u32 %v63, 4294901760
    %494 = vmatpush1.msra.mxu0 %v493
    %495 = vmatprep.subr.mxu0 0.0
    %v496 = vand.u32 %v64, 4294901760
    %497 = vmatpush1.msra.mxu0 %v496
    %498 = vmatprep.subr.mxu0 0.0
    %499 = vmatpush1.msra.mxu0 0.0
    %500 = vmatprep.subr.mxu0 0.0
    %501 = vmatpush1.msra.mxu0 0.0
    %502 = vmatprep.subr.mxu0 0.0
    %503 = vmatpush1.msra.mxu0 0.0
    %504 = vmatprep.subr.mxu0 0.0
    %505 = vmatpush1.msra.mxu0 0.0
    %506 = vmatprep.subr.mxu0 0.0
    %507 = vmatpush1.msra.mxu0 0.0
    %508 = vmatprep.subr.mxu0 0.0
    %509 = vmatpush1.msra.mxu0 0.0
    %510 = vmatprep.subr.mxu0 0.0
    %511 = vmatpush1.msra.mxu0 0.0
    %512 = vmatprep.subr.mxu0 0.0
    %513 = vmatpush1.msra.mxu0 0.0
    %514 = vmatprep.subr.mxu0 0.0
    %515 = vmatpush1.msra.mxu0 0.0
    %516 = vmatprep.subr.mxu0 0.0
    %517 = vmatpush1.msra.mxu0 0.0
    %518 = vmatprep.subr.mxu0 0.0
    %519 = vmatpush1.msra.mxu0 0.0
    %520 = vmatprep.subr.mxu0 0.0
    %521 = vmatpush1.msra.mxu0 0.0
    %522 = vmatprep.subr.mxu0 0.0
    %523 = vmatpush1.msra.mxu0 0.0
    %524 = vmatprep.subr.mxu0 0.0
    %525 = vmatpush1.msra.mxu0 0.0
    %526 = vmatprep.subr.mxu0 0.0
    %527 = vmatpush1.msra.mxu0 0.0
    %528 = vmatprep.subr.mxu0 0.0
    %529 = vmatpush1.msra.mxu0 0.0
    %530 = vmatprep.subr.mxu0 0.0
    %531 = vmatpush1.msra.mxu0 0.0
    %532 = vmatprep.subr.mxu0 0.0
    %533 = vmatpush1.msra.mxu0 0.0
    %534 = vmatprep.subr.mxu0 0.0
    %535 = vmatpush1.msra.mxu0 0.0
    %536 = vmatprep.subr.mxu0 0.0
    %537 = vmatpush1.msra.mxu0 0.0
    %538 = vmatprep.subr.mxu0 0.0
    %539 = vmatpush1.msra.mxu0 0.0
    %540 = vmatprep.subr.mxu0 0.0
    %541 = vmatpush1.msra.mxu0 0.0
    %542 = vmatprep.subr.mxu0 0.0
    %543 = vmatpush1.msra.mxu0 0.0
    %544 = vmatprep.subr.mxu0 0.0
    %545 = vmatpush1.msra.mxu0 0.0
    %546 = vmatprep.subr.mxu0 0.0
    %547 = vmatpush1.msra.mxu0 0.0
    %548 = vmatprep.subr.mxu0 0.0
    %549 = vmatpush1.msra.mxu0 0.0
    %550 = vmatprep.subr.mxu0 0.0
    %551 = vmatpush1.msra.mxu0 0.0
    %552 = vmatprep.subr.mxu0 0.0
    %553 = vmatpush1.msra.mxu0 0.0
    %554 = vmatprep.mubr.f32.mxu0 0.0
    %v555 = vand.u32 %v74, 4294901760
    %556 = vmatmul.mubr.f32.gmra.mrb[0].mxu0 %v555
    %v557 = vpop.f32.mrb[0].mxu0
    %v558 = vadd.f32 %v483, %v557
    %v559 = vpop.f32.mrb[0].mxu0
    %560 = vdwg.mxu0
    %v561 = vtanh.pop %v558
    %v562 = vld [vmem:[#allocation7] sm:$0xff]
    %v563 = vld [vmem:[#allocation7 + $0x8] sm:$0xff]
    %v564 = vld [vmem:[#allocation7 + $0x10] sm:$0xff]
    %v565 = vld [vmem:[#allocation7 + $0x18] sm:$0xff]
    %v566 = vld [vmem:[#allocation7 + $0x20] sm:$0xff]
    %v567 = vld [vmem:[#allocation7 + $0x28] sm:$0xff]
    %v568 = vld [vmem:[#allocation7 + $0x30] sm:$0xff]
    %v569 = vld [vmem:[#allocation7 + $0x38] sm:$0xff]
    %v570 = vld [vmem:[#allocation7 + $0x40] sm:$0xff]
    %v571 = vld [vmem:[#allocation7 + $0x48] sm:$0xff]
    %v572 = vld [vmem:[#allocation7 + $0x50] sm:$0xff]
    %v573 = vld [vmem:[#allocation7 + $0x58] sm:$0xff]
    %v574 = vld [vmem:[#allocation7 + $0x60] sm:$0xff]
    %v575 = vld [vmem:[#allocation7 + $0x68] sm:$0xff]
    %v576 = vld [vmem:[#allocation7 + $0x70] sm:$0xff]
    %v577 = vld [vmem:[#allocation7 + $0x78] sm:$0xff]
    %v578 = vld [vmem:[%s4] sm:$0x1]
    %v580 = vlaneseq
    %v581 = vshrl.u32 %v580, 7
    %v582 = vsub.s32 0, %v581
    %v583 = vrot.slane %v578, %v582
    %585 = vmatprep.subr.mxu0 0.0
    %v586 = vand.u32 %v562, 4294901760
    %587 = vmatpush1.msra.mxu0 %v586
    %588 = vmatprep.subr.mxu0 0.0
    %v589 = vand.u32 %v563, 4294901760
    %590 = vmatpush1.msra.mxu0 %v589
    %591 = vmatprep.subr.mxu0 0.0
    %v592 = vand.u32 %v564, 4294901760
    %593 = vmatpush1.msra.mxu0 %v592
    %594 = vmatprep.subr.mxu0 0.0
    %v595 = vand.u32 %v565, 4294901760
    %596 = vmatpush1.msra.mxu0 %v595
    %597 = vmatprep.subr.mxu0 0.0
    %v598 = vand.u32 %v566, 4294901760
    %599 = vmatpush1.msra.mxu0 %v598
    %600 = vmatprep.subr.mxu0 0.0
    %v601 = vand.u32 %v567, 4294901760
    %602 = vmatpush1.msra.mxu0 %v601
    %603 = vmatprep.subr.mxu0 0.0
    %v604 = vand.u32 %v568, 4294901760
    %605 = vmatpush1.msra.mxu0 %v604
    %606 = vmatprep.subr.mxu0 0.0
    %v607 = vand.u32 %v569, 4294901760
    %608 = vmatpush1.msra.mxu0 %v607
    %609 = vmatprep.subr.mxu0 0.0
    %v610 = vand.u32 %v570, 4294901760
    %611 = vmatpush1.msra.mxu0 %v610
    %612 = vmatprep.subr.mxu0 0.0
    %v613 = vand.u32 %v571, 4294901760
    %614 = vmatpush1.msra.mxu0 %v613
    %615 = vmatprep.subr.mxu0 0.0
    %v616 = vand.u32 %v572, 4294901760
    %617 = vmatpush1.msra.mxu0 %v616
    %618 = vmatprep.subr.mxu0 0.0
    %v619 = vand.u32 %v573, 4294901760
    %620 = vmatpush1.msra.mxu0 %v619
    %621 = vmatprep.subr.mxu0 0.0
    %v622 = vand.u32 %v574, 4294901760
    %623 = vmatpush1.msra.mxu0 %v622
    %624 = vmatprep.subr.mxu0 0.0
    %v625 = vand.u32 %v575, 4294901760
    %626 = vmatpush1.msra.mxu0 %v625
    %627 = vmatprep.subr.mxu0 0.0
    %v628 = vand.u32 %v576, 4294901760
    %629 = vmatpush1.msra.mxu0 %v628
    %630 = vmatprep.subr.mxu0 0.0
    %v631 = vand.u32 %v577, 4294901760
    %632 = vmatpush1.msra.mxu0 %v631
    %633 = vmatprep.subr.mxu0 0.0
    %634 = vmatpush1.msra.mxu0 0.0
    %635 = vmatprep.subr.mxu0 0.0
    %636 = vmatpush1.msra.mxu0 0.0
    %637 = vmatprep.subr.mxu0 0.0
    %638 = vmatpush1.msra.mxu0 0.0
    %639 = vmatprep.subr.mxu0 0.0
    %640 = vmatpush1.msra.mxu0 0.0
    %641 = vmatprep.subr.mxu0 0.0
    %642 = vmatpush1.msra.mxu0 0.0
    %643 = vmatprep.subr.mxu0 0.0
    %644 = vmatpush1.msra.mxu0 0.0
    %645 = vmatprep.subr.mxu0 0.0
    %646 = vmatpush1.msra.mxu0 0.0
    %647 = vmatprep.subr.mxu0 0.0
    %648 = vmatpush1.msra.mxu0 0.0
    %649 = vmatprep.subr.mxu0 0.0
    %650 = vmatpush1.msra.mxu0 0.0
    %651 = vmatprep.subr.mxu0 0.0
    %652 = vmatpush1.msra.mxu0 0.0
    %653 = vmatprep.subr.mxu0 0.0
    %654 = vmatpush1.msra.mxu0 0.0
    %655 = vmatprep.subr.mxu0 0.0
    %656 = vmatpush1.msra.mxu0 0.0
    %657 = vmatprep.subr.mxu0 0.0
    %658 = vmatpush1.msra.mxu0 0.0
    %659 = vmatprep.subr.mxu0 0.0
    %660 = vmatpush1.msra.mxu0 0.0
    %661 = vmatprep.subr.mxu0 0.0
    %662 = vmatpush1.msra.mxu0 0.0
    %663 = vmatprep.subr.mxu0 0.0
    %664 = vmatpush1.msra.mxu0 0.0
    %665 = vmatprep.mubr.f32.mxu0 0.0
    %v666 = vand.u32 %v561, 4294901760
    %v667 = vsub.f32 %v561, %v666
    %v668 = vand.u32 %v667, 4294901760
    %v669 = vsub.f32 %v667, %v668
    %v670 = vand.u32 %v669, 4294901760
    %671 = vmatmul.mubr.f32.gmra.mrb[0].mxu0 %v670
    %v672 = vpop.f32.mrb[0].mxu0
    %v673 = vadd.f32 %v583, %v672
    %v674 = vpop.f32.mrb[0].mxu0
    %675 = vdwg.mxu0
    %676 = vmatprep.subr.mxu0 0.0
    %v677 = vand.u32 %v562, 4294901760
    %v678 = vsub.f32 %v562, %v677
    %v679 = vand.u32 %v678, 4294901760
    %v680 = vsub.f32 %v678, %v679
    %v681 = vand.u32 %v680, 4294901760
    %682 = vmatpush1.msra.mxu0 %v681
    %683 = vmatprep.subr.mxu0 0.0
    %v684 = vand.u32 %v563, 4294901760
    %v685 = vsub.f32 %v563, %v684
    %v686 = vand.u32 %v685, 4294901760
    %v687 = vsub.f32 %v685, %v686
    %v688 = vand.u32 %v687, 4294901760
    %689 = vmatpush1.msra.mxu0 %v688
    %690 = vmatprep.subr.mxu0 0.0
    %v691 = vand.u32 %v564, 4294901760
    %v692 = vsub.f32 %v564, %v691
    %v693 = vand.u32 %v692, 4294901760
    %v694 = vsub.f32 %v692, %v693
    %v695 = vand.u32 %v694, 4294901760
    %696 = vmatpush1.msra.mxu0 %v695
    %697 = vmatprep.subr.mxu0 0.0
    %v698 = vand.u32 %v565, 4294901760
    %v699 = vsub.f32 %v565, %v698
    %v700 = vand.u32 %v699, 4294901760
    %v701 = vsub.f32 %v699, %v700
    %v702 = vand.u32 %v701, 4294901760
    %703 = vmatpush1.msra.mxu0 %v702
    %704 = vmatprep.subr.mxu0 0.0
    %v705 = vand.u32 %v566, 4294901760
    %v706 = vsub.f32 %v566, %v705
    %v707 = vand.u32 %v706, 4294901760
    %v708 = vsub.f32 %v706, %v707
    %v709 = vand.u32 %v708, 4294901760
    %710 = vmatpush1.msra.mxu0 %v709
    %711 = vmatprep.subr.mxu0 0.0
    %v712 = vand.u32 %v567, 4294901760
    %v713 = vsub.f32 %v567, %v712
    %v714 = vand.u32 %v713, 4294901760
    %v715 = vsub.f32 %v713, %v714
    %v716 = vand.u32 %v715, 4294901760
    %717 = vmatpush1.msra.mxu0 %v716
    %718 = vmatprep.subr.mxu0 0.0
    %v719 = vand.u32 %v568, 4294901760
    %v720 = vsub.f32 %v568, %v719
    %v721 = vand.u32 %v720, 4294901760
    %v722 = vsub.f32 %v720, %v721
    %v723 = vand.u32 %v722, 4294901760
    %724 = vmatpush1.msra.mxu0 %v723
    %725 = vmatprep.subr.mxu0 0.0
    %v726 = vand.u32 %v569, 4294901760
    %v727 = vsub.f32 %v569, %v726
    %v728 = vand.u32 %v727, 4294901760
    %v729 = vsub.f32 %v727, %v728
    %v730 = vand.u32 %v729, 4294901760
    %731 = vmatpush1.msra.mxu0 %v730
    %732 = vmatprep.subr.mxu0 0.0
    %v733 = vand.u32 %v570, 4294901760
    %v734 = vsub.f32 %v570, %v733
    %v735 = vand.u32 %v734, 4294901760
    %v736 = vsub.f32 %v734, %v735
    %v737 = vand.u32 %v736, 4294901760
    %738 = vmatpush1.msra.mxu0 %v737
    %739 = vmatprep.subr.mxu0 0.0
    %v740 = vand.u32 %v571, 4294901760
    %v741 = vsub.f32 %v571, %v740
    %v742 = vand.u32 %v741, 4294901760
    %v743 = vsub.f32 %v741, %v742
    %v744 = vand.u32 %v743, 4294901760
    %745 = vmatpush1.msra.mxu0 %v744
    %746 = vmatprep.subr.mxu0 0.0
    %v747 = vand.u32 %v572, 4294901760
    %v748 = vsub.f32 %v572, %v747
    %v749 = vand.u32 %v748, 4294901760
    %v750 = vsub.f32 %v748, %v749
    %v751 = vand.u32 %v750, 4294901760
    %752 = vmatpush1.msra.mxu0 %v751
    %753 = vmatprep.subr.mxu0 0.0
    %v754 = vand.u32 %v573, 4294901760
    %v755 = vsub.f32 %v573, %v754
    %v756 = vand.u32 %v755, 4294901760
    %v757 = vsub.f32 %v755, %v756
    %v758 = vand.u32 %v757, 4294901760
    %759 = vmatpush1.msra.mxu0 %v758
    %760 = vmatprep.subr.mxu0 0.0
    %v761 = vand.u32 %v574, 4294901760
    %v762 = vsub.f32 %v574, %v761
    %v763 = vand.u32 %v762, 4294901760
    %v764 = vsub.f32 %v762, %v763
    %v765 = vand.u32 %v764, 4294901760
    %766 = vmatpush1.msra.mxu0 %v765
    %767 = vmatprep.subr.mxu0 0.0
    %v768 = vand.u32 %v575, 4294901760
    %v769 = vsub.f32 %v575, %v768
    %v770 = vand.u32 %v769, 4294901760
    %v771 = vsub.f32 %v769, %v770
    %v772 = vand.u32 %v771, 4294901760
    %773 = vmatpush1.msra.mxu0 %v772
    %774 = vmatprep.subr.mxu0 0.0
    %v775 = vand.u32 %v576, 4294901760
    %v776 = vsub.f32 %v576, %v775
    %v777 = vand.u32 %v776, 4294901760
    %v778 = vsub.f32 %v776, %v777
    %v779 = vand.u32 %v778, 4294901760
    %780 = vmatpush1.msra.mxu0 %v779
    %781 = vmatprep.subr.mxu0 0.0
    %v782 = vand.u32 %v577, 4294901760
    %v783 = vsub.f32 %v577, %v782
    %v784 = vand.u32 %v783, 4294901760
    %v785 = vsub.f32 %v783, %v784
    %v786 = vand.u32 %v785, 4294901760
    %787 = vmatpush1.msra.mxu0 %v786
    %788 = vmatprep.subr.mxu0 0.0
    %789 = vmatpush1.msra.mxu0 0.0
    %790 = vmatprep.subr.mxu0 0.0
    %791 = vmatpush1.msra.mxu0 0.0
    %792 = vmatprep.subr.mxu0 0.0
    %793 = vmatpush1.msra.mxu0 0.0
    %794 = vmatprep.subr.mxu0 0.0
    %795 = vmatpush1.msra.mxu0 0.0
    %796 = vmatprep.subr.mxu0 0.0
    %797 = vmatpush1.msra.mxu0 0.0
    %798 = vmatprep.subr.mxu0 0.0
    %799 = vmatpush1.msra.mxu0 0.0
    %800 = vmatprep.subr.mxu0 0.0
    %801 = vmatpush1.msra.mxu0 0.0
    %802 = vmatprep.subr.mxu0 0.0
    %803 = vmatpush1.msra.mxu0 0.0
    %804 = vmatprep.subr.mxu0 0.0
    %805 = vmatpush1.msra.mxu0 0.0
    %806 = vmatprep.subr.mxu0 0.0
    %807 = vmatpush1.msra.mxu0 0.0
    %808 = vmatprep.subr.mxu0 0.0
    %809 = vmatpush1.msra.mxu0 0.0
    %810 = vmatprep.subr.mxu0 0.0
    %811 = vmatpush1.msra.mxu0 0.0
    %812 = vmatprep.subr.mxu0 0.0
    %813 = vmatpush1.msra.mxu0 0.0
    %814 = vmatprep.subr.mxu0 0.0
    %815 = vmatpush1.msra.mxu0 0.0
    %816 = vmatprep.subr.mxu0 0.0
    %817 = vmatpush1.msra.mxu0 0.0
    %818 = vmatprep.subr.mxu0 0.0
    %819 = vmatpush1.msra.mxu0 0.0
    %820 = vmatprep.mubr.f32.mxu0 0.0
    %v821 = vand.u32 %v561, 4294901760
    %822 = vmatmul.mubr.f32.gmra.mrb[0].mxu0 %v821
    %v823 = vpop.f32.mrb[0].mxu0
    %v824 = vadd.f32 %v673, %v823
    %v825 = vpop.f32.mrb[0].mxu0
    %826 = vdwg.mxu0
    %827 = vmatprep.subr.mxu0 0.0
    %v828 = vand.u32 %v562, 4294901760
    %v829 = vsub.f32 %v562, %v828
    %830 = vmatpush1.msra.mxu0 %v829
    %831 = vmatprep.subr.mxu0 0.0
    %v832 = vand.u32 %v563, 4294901760
    %v833 = vsub.f32 %v563, %v832
    %834 = vmatpush1.msra.mxu0 %v833
    %835 = vmatprep.subr.mxu0 0.0
    %v836 = vand.u32 %v564, 4294901760
    %v837 = vsub.f32 %v564, %v836
    %838 = vmatpush1.msra.mxu0 %v837
    %839 = vmatprep.subr.mxu0 0.0
    %v840 = vand.u32 %v565, 4294901760
    %v841 = vsub.f32 %v565, %v840
    %842 = vmatpush1.msra.mxu0 %v841
    %843 = vmatprep.subr.mxu0 0.0
    %v844 = vand.u32 %v566, 4294901760
    %v845 = vsub.f32 %v566, %v844
    %846 = vmatpush1.msra.mxu0 %v845
    %847 = vmatprep.subr.mxu0 0.0
    %v848 = vand.u32 %v567, 4294901760
    %v849 = vsub.f32 %v567, %v848
    %850 = vmatpush1.msra.mxu0 %v849
    %851 = vmatprep.subr.mxu0 0.0
    %v852 = vand.u32 %v568, 4294901760
    %v853 = vsub.f32 %v568, %v852
    %854 = vmatpush1.msra.mxu0 %v853
    %855 = vmatprep.subr.mxu0 0.0
    %v856 = vand.u32 %v569, 4294901760
    %v857 = vsub.f32 %v569, %v856
    %858 = vmatpush1.msra.mxu0 %v857
    %859 = vmatprep.subr.mxu0 0.0
    %v860 = vand.u32 %v570, 4294901760
    %v861 = vsub.f32 %v570, %v860
    %862 = vmatpush1.msra.mxu0 %v861
    %863 = vmatprep.subr.mxu0 0.0
    %v864 = vand.u32 %v571, 4294901760
    %v865 = vsub.f32 %v571, %v864
    %866 = vmatpush1.msra.mxu0 %v865
    %867 = vmatprep.subr.mxu0 0.0
    %v868 = vand.u32 %v572, 4294901760
    %v869 = vsub.f32 %v572, %v868
    %870 = vmatpush1.msra.mxu0 %v869
    %871 = vmatprep.subr.mxu0 0.0
    %v872 = vand.u32 %v573, 4294901760
    %v873 = vsub.f32 %v573, %v872
    %874 = vmatpush1.msra.mxu0 %v873
    %875 = vmatprep.subr.mxu0 0.0
    %v876 = vand.u32 %v574, 4294901760
    %v877 = vsub.f32 %v574, %v876
    %878 = vmatpush1.msra.mxu0 %v877
    %879 = vmatprep.subr.mxu0 0.0
    %v880 = vand.u32 %v575, 4294901760
    %v881 = vsub.f32 %v575, %v880
    %882 = vmatpush1.msra.mxu0 %v881
    %883 = vmatprep.subr.mxu0 0.0
    %v884 = vand.u32 %v576, 4294901760
    %v885 = vsub.f32 %v576, %v884
    %886 = vmatpush1.msra.mxu0 %v885
    %887 = vmatprep.subr.mxu0 0.0
    %v888 = vand.u32 %v577, 4294901760
    %v889 = vsub.f32 %v577, %v888
    %890 = vmatpush1.msra.mxu0 %v889
    %891 = vmatprep.subr.mxu0 0.0
    %892 = vmatpush1.msra.mxu0 0.0
    %893 = vmatprep.subr.mxu0 0.0
    %894 = vmatpush1.msra.mxu0 0.0
    %895 = vmatprep.subr.mxu0 0.0
    %896 = vmatpush1.msra.mxu0 0.0
    %897 = vmatprep.subr.mxu0 0.0
    %898 = vmatpush1.msra.mxu0 0.0
    %899 = vmatprep.subr.mxu0 0.0
    %900 = vmatpush1.msra.mxu0 0.0
    %901 = vmatprep.subr.mxu0 0.0
    %902 = vmatpush1.msra.mxu0 0.0
    %903 = vmatprep.subr.mxu0 0.0
    %904 = vmatpush1.msra.mxu0 0.0
    %905 = vmatprep.subr.mxu0 0.0
    %906 = vmatpush1.msra.mxu0 0.0
    %907 = vmatprep.subr.mxu0 0.0
    %908 = vmatpush1.msra.mxu0 0.0
    %909 = vmatprep.subr.mxu0 0.0
    %910 = vmatpush1.msra.mxu0 0.0
    %911 = vmatprep.subr.mxu0 0.0
    %912 = vmatpush1.msra.mxu0 0.0
    %913 = vmatprep.subr.mxu0 0.0
    %914 = vmatpush1.msra.mxu0 0.0
    %915 = vmatprep.subr.mxu0 0.0
    %916 = vmatpush1.msra.mxu0 0.0
    %917 = vmatprep.subr.mxu0 0.0
    %918 = vmatpush1.msra.mxu0 0.0
    %919 = vmatprep.subr.mxu0 0.0
    %920 = vmatpush1.msra.mxu0 0.0
    %921 = vmatprep.subr.mxu0 0.0
    %922 = vmatpush1.msra.mxu0 0.0
    %923 = vmatprep.mubr.f32.mxu0 0.0
    %v924 = vand.u32 %v561, 4294901760
    %v925 = vsub.f32 %v561, %v924
    %926 = vmatmul.mubr.f32.gmra.mrb[0].mxu0 %v925
    %v927 = vpop.f32.mrb[0].mxu0
    %v928 = vadd.f32 %v824, %v927
    %v929 = vpop.f32.mrb[0].mxu0
    %930 = vdwg.mxu0
    %931 = vmatprep.subr.mxu0 0.0
    %v932 = vand.u32 %v562, 4294901760
    %933 = vmatpush1.msra.mxu0 %v932
    %934 = vmatprep.subr.mxu0 0.0
    %v935 = vand.u32 %v563, 4294901760
    %936 = vmatpush1.msra.mxu0 %v935
    %937 = vmatprep.subr.mxu0 0.0
    %v938 = vand.u32 %v564, 4294901760
    %939 = vmatpush1.msra.mxu0 %v938
    %940 = vmatprep.subr.mxu0 0.0
    %v941 = vand.u32 %v565, 4294901760
    %942 = vmatpush1.msra.mxu0 %v941
    %943 = vmatprep.subr.mxu0 0.0
    %v944 = vand.u32 %v566, 4294901760
    %945 = vmatpush1.msra.mxu0 %v944
    %946 = vmatprep.subr.mxu0 0.0
    %v947 = vand.u32 %v567, 4294901760
    %948 = vmatpush1.msra.mxu0 %v947
    %949 = vmatprep.subr.mxu0 0.0
    %v950 = vand.u32 %v568, 4294901760
    %951 = vmatpush1.msra.mxu0 %v950
    %952 = vmatprep.subr.mxu0 0.0
    %v953 = vand.u32 %v569, 4294901760
    %954 = vmatpush1.msra.mxu0 %v953
    %955 = vmatprep.subr.mxu0 0.0
    %v956 = vand.u32 %v570, 4294901760
    %957 = vmatpush1.msra.mxu0 %v956
    %958 = vmatprep.subr.mxu0 0.0
    %v959 = vand.u32 %v571, 4294901760
    %960 = vmatpush1.msra.mxu0 %v959
    %961 = vmatprep.subr.mxu0 0.0
    %v962 = vand.u32 %v572, 4294901760
    %963 = vmatpush1.msra.mxu0 %v962
    %964 = vmatprep.subr.mxu0 0.0
    %v965 = vand.u32 %v573, 4294901760
    %966 = vmatpush1.msra.mxu0 %v965
    %967 = vmatprep.subr.mxu0 0.0
    %v968 = vand.u32 %v574, 4294901760
    %969 = vmatpush1.msra.mxu0 %v968
    %970 = vmatprep.subr.mxu0 0.0
    %v971 = vand.u32 %v575, 4294901760
    %972 = vmatpush1.msra.mxu0 %v971
    %973 = vmatprep.subr.mxu0 0.0
    %v974 = vand.u32 %v576, 4294901760
    %975 = vmatpush1.msra.mxu0 %v974
    %976 = vmatprep.subr.mxu0 0.0
    %v977 = vand.u32 %v577, 4294901760
    %978 = vmatpush1.msra.mxu0 %v977
    %979 = vmatprep.subr.mxu0 0.0
    %980 = vmatpush1.msra.mxu0 0.0
    %981 = vmatprep.subr.mxu0 0.0
    %982 = vmatpush1.msra.mxu0 0.0
    %983 = vmatprep.subr.mxu0 0.0
    %984 = vmatpush1.msra.mxu0 0.0
    %985 = vmatprep.subr.mxu0 0.0
    %986 = vmatpush1.msra.mxu0 0.0
    %987 = vmatprep.subr.mxu0 0.0
    %988 = vmatpush1.msra.mxu0 0.0
    %989 = vmatprep.subr.mxu0 0.0
    %990 = vmatpush1.msra.mxu0 0.0
    %991 = vmatprep.subr.mxu0 0.0
    %992 = vmatpush1.msra.mxu0 0.0
    %993 = vmatprep.subr.mxu0 0.0
    %994 = vmatpush1.msra.mxu0 0.0
    %995 = vmatprep.subr.mxu0 0.0
    %996 = vmatpush1.msra.mxu0 0.0
    %997 = vmatprep.subr.mxu0 0.0
    %998 = vmatpush1.msra.mxu0 0.0
    %999 = vmatprep.subr.mxu0 0.0
    %1000 = vmatpush1.msra.mxu0 0.0
    %1001 = vmatprep.subr.mxu0 0.0
    %1002 = vmatpush1.msra.mxu0 0.0
    %1003 = vmatprep.subr.mxu0 0.0
    %1004 = vmatpush1.msra.mxu0 0.0
    %1005 = vmatprep.subr.mxu0 0.0
    %1006 = vmatpush1.msra.mxu0 0.0
    %1007 = vmatprep.subr.mxu0 0.0
    %1008 = vmatpush1.msra.mxu0 0.0
    %1009 = vmatprep.subr.mxu0 0.0
    %1010 = vmatpush1.msra.mxu0 0.0
    %1011 = vmatprep.mubr.f32.mxu0 0.0
    %v1012 = vand.u32 %v561, 4294901760
    %v1013 = vsub.f32 %v561, %v1012
    %v1014 = vand.u32 %v1013, 4294901760
    %1015 = vmatmul.mubr.f32.gmra.mrb[0].mxu0 %v1014
    %v1016 = vpop.f32.mrb[0].mxu0
    %v1017 = vadd.f32 %v928, %v1016
    %v1018 = vpop.f32.mrb[0].mxu0
    %1019 = vdwg.mxu0
    %1020 = vmatprep.subr.mxu0 0.0
    %v1021 = vand.u32 %v562, 4294901760
    %v1022 = vsub.f32 %v562, %v1021
    %v1023 = vand.u32 %v1022, 4294901760
    %1024 = vmatpush1.msra.mxu0 %v1023
    %1025 = vmatprep.subr.mxu0 0.0
    %v1026 = vand.u32 %v563, 4294901760
    %v1027 = vsub.f32 %v563, %v1026
    %v1028 = vand.u32 %v1027, 4294901760
    %1029 = vmatpush1.msra.mxu0 %v1028
    %1030 = vmatprep.subr.mxu0 0.0
    %v1031 = vand.u32 %v564, 4294901760
    %v1032 = vsub.f32 %v564, %v1031
    %v1033 = vand.u32 %v1032, 4294901760
    %1034 = vmatpush1.msra.mxu0 %v1033
    %1035 = vmatprep.subr.mxu0 0.0
    %v1036 = vand.u32 %v565, 4294901760
    %v1037 = vsub.f32 %v565, %v1036
    %v1038 = vand.u32 %v1037, 4294901760
    %1039 = vmatpush1.msra.mxu0 %v1038
    %1040 = vmatprep.subr.mxu0 0.0
    %v1041 = vand.u32 %v566, 4294901760
    %v1042 = vsub.f32 %v566, %v1041
    %v1043 = vand.u32 %v1042, 4294901760
    %1044 = vmatpush1.msra.mxu0 %v1043
    %1045 = vmatprep.subr.mxu0 0.0
    %v1046 = vand.u32 %v567, 4294901760
    %v1047 = vsub.f32 %v567, %v1046
    %v1048 = vand.u32 %v1047, 4294901760
    %1049 = vmatpush1.msra.mxu0 %v1048
    %1050 = vmatprep.subr.mxu0 0.0
    %v1051 = vand.u32 %v568, 4294901760
    %v1052 = vsub.f32 %v568, %v1051
    %v1053 = vand.u32 %v1052, 4294901760
    %1054 = vmatpush1.msra.mxu0 %v1053
    %1055 = vmatprep.subr.mxu0 0.0
    %v1056 = vand.u32 %v569, 4294901760
    %v1057 = vsub.f32 %v569, %v1056
    %v1058 = vand.u32 %v1057, 4294901760
    %1059 = vmatpush1.msra.mxu0 %v1058
    %1060 = vmatprep.subr.mxu0 0.0
    %v1061 = vand.u32 %v570, 4294901760
    %v1062 = vsub.f32 %v570, %v1061
    %v1063 = vand.u32 %v1062, 4294901760
    %1064 = vmatpush1.msra.mxu0 %v1063
    %1065 = vmatprep.subr.mxu0 0.0
    %v1066 = vand.u32 %v571, 4294901760
    %v1067 = vsub.f32 %v571, %v1066
    %v1068 = vand.u32 %v1067, 4294901760
    %1069 = vmatpush1.msra.mxu0 %v1068
    %1070 = vmatprep.subr.mxu0 0.0
    %v1071 = vand.u32 %v572, 4294901760
    %v1072 = vsub.f32 %v572, %v1071
    %v1073 = vand.u32 %v1072, 4294901760
    %1074 = vmatpush1.msra.mxu0 %v1073
    %1075 = vmatprep.subr.mxu0 0.0
    %v1076 = vand.u32 %v573, 4294901760
    %v1077 = vsub.f32 %v573, %v1076
    %v1078 = vand.u32 %v1077, 4294901760
    %1079 = vmatpush1.msra.mxu0 %v1078
    %1080 = vmatprep.subr.mxu0 0.0
    %v1081 = vand.u32 %v574, 4294901760
    %v1082 = vsub.f32 %v574, %v1081
    %v1083 = vand.u32 %v1082, 4294901760
    %1084 = vmatpush1.msra.mxu0 %v1083
    %1085 = vmatprep.subr.mxu0 0.0
    %v1086 = vand.u32 %v575, 4294901760
    %v1087 = vsub.f32 %v575, %v1086
    %v1088 = vand.u32 %v1087, 4294901760
    %1089 = vmatpush1.msra.mxu0 %v1088
    %1090 = vmatprep.subr.mxu0 0.0
    %v1091 = vand.u32 %v576, 4294901760
    %v1092 = vsub.f32 %v576, %v1091
    %v1093 = vand.u32 %v1092, 4294901760
    %1094 = vmatpush1.msra.mxu0 %v1093
    %1095 = vmatprep.subr.mxu0 0.0
    %v1096 = vand.u32 %v577, 4294901760
    %v1097 = vsub.f32 %v577, %v1096
    %v1098 = vand.u32 %v1097, 4294901760
    %1099 = vmatpush1.msra.mxu0 %v1098
    %1100 = vmatprep.subr.mxu0 0.0
    %1101 = vmatpush1.msra.mxu0 0.0
    %1102 = vmatprep.subr.mxu0 0.0
    %1103 = vmatpush1.msra.mxu0 0.0
    %1104 = vmatprep.subr.mxu0 0.0
    %1105 = vmatpush1.msra.mxu0 0.0
    %1106 = vmatprep.subr.mxu0 0.0
    %1107 = vmatpush1.msra.mxu0 0.0
    %1108 = vmatprep.subr.mxu0 0.0
    %1109 = vmatpush1.msra.mxu0 0.0
    %1110 = vmatprep.subr.mxu0 0.0
    %1111 = vmatpush1.msra.mxu0 0.0
    %1112 = vmatprep.subr.mxu0 0.0
    %1113 = vmatpush1.msra.mxu0 0.0
    %1114 = vmatprep.subr.mxu0 0.0
    %1115 = vmatpush1.msra.mxu0 0.0
    %1116 = vmatprep.subr.mxu0 0.0
    %1117 = vmatpush1.msra.mxu0 0.0
    %1118 = vmatprep.subr.mxu0 0.0
    %1119 = vmatpush1.msra.mxu0 0.0
    %1120 = vmatprep.subr.mxu0 0.0
    %1121 = vmatpush1.msra.mxu0 0.0
    %1122 = vmatprep.subr.mxu0 0.0
    %1123 = vmatpush1.msra.mxu0 0.0
    %1124 = vmatprep.subr.mxu0 0.0
    %1125 = vmatpush1.msra.mxu0 0.0
    %1126 = vmatprep.subr.mxu0 0.0
    %1127 = vmatpush1.msra.mxu0 0.0
    %1128 = vmatprep.subr.mxu0 0.0
    %1129 = vmatpush1.msra.mxu0 0.0
    %1130 = vmatprep.subr.mxu0 0.0
    %1131 = vmatpush1.msra.mxu0 0.0
    %1132 = vmatprep.mubr.f32.mxu0 0.0
    %v1133 = vand.u32 %v561, 4294901760
    %1134 = vmatmul.mubr.f32.gmra.mrb[0].mxu0 %v1133
    %v1135 = vpop.f32.mrb[0].mxu0
    %v1136 = vadd.f32 %v1017, %v1135
    %v1137 = vpop.f32.mrb[0].mxu0
    %1138 = vdwg.mxu0
    %1139 = vmatprep.subr.mxu0 0.0
    %v1140 = vand.u32 %v562, 4294901760
    %1141 = vmatpush1.msra.mxu0 %v1140
    %1142 = vmatprep.subr.mxu0 0.0
    %v1143 = vand.u32 %v563, 4294901760
    %1144 = vmatpush1.msra.mxu0 %v1143
    %1145 = vmatprep.subr.mxu0 0.0
    %v1146 = vand.u32 %v564, 4294901760
    %1147 = vmatpush1.msra.mxu0 %v1146
    %1148 = vmatprep.subr.mxu0 0.0
    %v1149 = vand.u32 %v565, 4294901760
    %1150 = vmatpush1.msra.mxu0 %v1149
    %1151 = vmatprep.subr.mxu0 0.0
    %v1152 = vand.u32 %v566, 4294901760
    %1153 = vmatpush1.msra.mxu0 %v1152
    %1154 = vmatprep.subr.mxu0 0.0
    %v1155 = vand.u32 %v567, 4294901760
    %1156 = vmatpush1.msra.mxu0 %v1155
    %1157 = vmatprep.subr.mxu0 0.0
    %v1158 = vand.u32 %v568, 4294901760
    %1159 = vmatpush1.msra.mxu0 %v1158
    %1160 = vmatprep.subr.mxu0 0.0
    %v1161 = vand.u32 %v569, 4294901760
    %1162 = vmatpush1.msra.mxu0 %v1161
    %1163 = vmatprep.subr.mxu0 0.0
    %v1164 = vand.u32 %v570, 4294901760
    %1165 = vmatpush1.msra.mxu0 %v1164
    %1166 = vmatprep.subr.mxu0 0.0
    %v1167 = vand.u32 %v571, 4294901760
    %1168 = vmatpush1.msra.mxu0 %v1167
    %1169 = vmatprep.subr.mxu0 0.0
    %v1170 = vand.u32 %v572, 4294901760
    %1171 = vmatpush1.msra.mxu0 %v1170
    %1172 = vmatprep.subr.mxu0 0.0
    %v1173 = vand.u32 %v573, 4294901760
    %1174 = vmatpush1.msra.mxu0 %v1173
    %1175 = vmatprep.subr.mxu0 0.0
    %v1176 = vand.u32 %v574, 4294901760
    %1177 = vmatpush1.msra.mxu0 %v1176
    %1178 = vmatprep.subr.mxu0 0.0
    %v1179 = vand.u32 %v575, 4294901760
    %1180 = vmatpush1.msra.mxu0 %v1179
    %1181 = vmatprep.subr.mxu0 0.0
    %v1182 = vand.u32 %v576, 4294901760
    %1183 = vmatpush1.msra.mxu0 %v1182
    %1184 = vmatprep.subr.mxu0 0.0
    %v1185 = vand.u32 %v577, 4294901760
    %1186 = vmatpush1.msra.mxu0 %v1185
    %1187 = vmatprep.subr.mxu0 0.0
    %1188 = vmatpush1.msra.mxu0 0.0
    %1189 = vmatprep.subr.mxu0 0.0
    %1190 = vmatpush1.msra.mxu0 0.0
    %1191 = vmatprep.subr.mxu0 0.0
    %1192 = vmatpush1.msra.mxu0 0.0
    %1193 = vmatprep.subr.mxu0 0.0
    %1194 = vmatpush1.msra.mxu0 0.0
    %1195 = vmatprep.subr.mxu0 0.0
    %1196 = vmatpush1.msra.mxu0 0.0
    %1197 = vmatprep.subr.mxu0 0.0
    %1198 = vmatpush1.msra.mxu0 0.0
    %1199 = vmatprep.subr.mxu0 0.0
    %1200 = vmatpush1.msra.mxu0 0.0
    %1201 = vmatprep.subr.mxu0 0.0
    %1202 = vmatpush1.msra.mxu0 0.0
    %1203 = vmatprep.subr.mxu0 0.0
    %1204 = vmatpush1.msra.mxu0 0.0
    %1205 = vmatprep.subr.mxu0 0.0
    %1206 = vmatpush1.msra.mxu0 0.0
    %1207 = vmatprep.subr.mxu0 0.0
    %1208 = vmatpush1.msra.mxu0 0.0
    %1209 = vmatprep.subr.mxu0 0.0
    %1210 = vmatpush1.msra.mxu0 0.0
    %1211 = vmatprep.subr.mxu0 0.0
    %1212 = vmatpush1.msra.mxu0 0.0
    %1213 = vmatprep.subr.mxu0 0.0
    %1214 = vmatpush1.msra.mxu0 0.0
    %1215 = vmatprep.subr.mxu0 0.0
    %1216 = vmatpush1.msra.mxu0 0.0
    %1217 = vmatprep.subr.mxu0 0.0
    %1218 = vmatpush1.msra.mxu0 0.0
    %1219 = vmatprep.mubr.f32.mxu0 0.0
    %v1220 = vand.u32 %v561, 4294901760
    %1221 = vmatmul.mubr.f32.gmra.mrb[0].mxu0 %v1220
    %v1222 = vpop.f32.mrb[0].mxu0
    %v1223 = vadd.f32 %v1136, %v1222
    %v1224 = vpop.f32.mrb[0].mxu0
    %1225 = vdwg.mxu0
    %v1226 = vtanh.pop %v1223
    %s1227 = scalar_lea.vmem [#allocation7], 128
    %v1228 = vld [vmem:[%s1227] sm:$0xff]
    %v1229 = vld [vmem:[%s1227 + $0x8] sm:$0xff]
    %v1230 = vld [vmem:[%s1227 + $0x10] sm:$0xff]
    %v1231 = vld [vmem:[%s1227 + $0x18] sm:$0xff]
    %v1232 = vld [vmem:[%s1227 + $0x20] sm:$0xff]
    %v1233 = vld [vmem:[%s1227 + $0x28] sm:$0xff]
    %v1234 = vld [vmem:[%s1227 + $0x30] sm:$0xff]
    %v1235 = vld [vmem:[%s1227 + $0x38] sm:$0xff]
    %v1236 = vld [vmem:[%s1227 + $0x40] sm:$0xff]
    %v1237 = vld [vmem:[%s1227 + $0x48] sm:$0xff]
    %v1238 = vld [vmem:[%s1227 + $0x50] sm:$0xff]
    %v1239 = vld [vmem:[%s1227 + $0x58] sm:$0xff]
    %v1240 = vld [vmem:[%s1227 + $0x60] sm:$0xff]
    %v1241 = vld [vmem:[%s1227 + $0x68] sm:$0xff]
    %v1242 = vld [vmem:[%s1227 + $0x70] sm:$0xff]
    %v1243 = vld [vmem:[%s1227 + $0x78] sm:$0xff]
    %s1244 = scalar_lea.vmem %s4, 1
    %v1245 = vld [vmem:[%s1244] sm:$0x1]
    %v1247 = vlaneseq
    %v1248 = vshrl.u32 %v1247, 7
    %v1249 = vsub.s32 0, %v1248
    %v1250 = vrot.slane %v1245, %v1249
    %1252 = vmatprep.subr.mxu0 0.0
    %v1253 = vand.u32 %v1228, 4294901760
    %1254 = vmatpush1.msra.mxu0 %v1253
    %1255 = vmatprep.subr.mxu0 0.0
    %v1256 = vand.u32 %v1229, 4294901760
    %1257 = vmatpush1.msra.mxu0 %v1256
    %1258 = vmatprep.subr.mxu0 0.0
    %v1259 = vand.u32 %v1230, 4294901760
    %1260 = vmatpush1.msra.mxu0 %v1259
    %1261 = vmatprep.subr.mxu0 0.0
    %v1262 = vand.u32 %v1231, 4294901760
    %1263 = vmatpush1.msra.mxu0 %v1262
    %1264 = vmatprep.subr.mxu0 0.0
    %v1265 = vand.u32 %v1232, 4294901760
    %1266 = vmatpush1.msra.mxu0 %v1265
    %1267 = vmatprep.subr.mxu0 0.0
    %v1268 = vand.u32 %v1233, 4294901760
    %1269 = vmatpush1.msra.mxu0 %v1268
    %1270 = vmatprep.subr.mxu0 0.0
    %v1271 = vand.u32 %v1234, 4294901760
    %1272 = vmatpush1.msra.mxu0 %v1271
    %1273 = vmatprep.subr.mxu0 0.0
    %v1274 = vand.u32 %v1235, 4294901760
    %1275 = vmatpush1.msra.mxu0 %v1274
    %1276 = vmatprep.subr.mxu0 0.0
    %v1277 = vand.u32 %v1236, 4294901760
    %1278 = vmatpush1.msra.mxu0 %v1277
    %1279 = vmatprep.subr.mxu0 0.0
    %v1280 = vand.u32 %v1237, 4294901760
    %1281 = vmatpush1.msra.mxu0 %v1280
    %1282 = vmatprep.subr.mxu0 0.0
    %v1283 = vand.u32 %v1238, 4294901760
    %1284 = vmatpush1.msra.mxu0 %v1283
    %1285 = vmatprep.subr.mxu0 0.0
    %v1286 = vand.u32 %v1239, 4294901760
    %1287 = vmatpush1.msra.mxu0 %v1286
    %1288 = vmatprep.subr.mxu0 0.0
    %v1289 = vand.u32 %v1240, 4294901760
    %1290 = vmatpush1.msra.mxu0 %v1289
    %1291 = vmatprep.subr.mxu0 0.0
    %v1292 = vand.u32 %v1241, 4294901760
    %1293 = vmatpush1.msra.mxu0 %v1292
    %1294 = vmatprep.subr.mxu0 0.0
    %v1295 = vand.u32 %v1242, 4294901760
    %1296 = vmatpush1.msra.mxu0 %v1295
    %1297 = vmatprep.subr.mxu0 0.0
    %v1298 = vand.u32 %v1243, 4294901760
    %1299 = vmatpush1.msra.mxu0 %v1298
    %1300 = vmatprep.subr.mxu0 0.0
    %1301 = vmatpush1.msra.mxu0 0.0
    %1302 = vmatprep.subr.mxu0 0.0
    %1303 = vmatpush1.msra.mxu0 0.0
    %1304 = vmatprep.subr.mxu0 0.0
    %1305 = vmatpush1.msra.mxu0 0.0
    %1306 = vmatprep.subr.mxu0 0.0
    %1307 = vmatpush1.msra.mxu0 0.0
    %1308 = vmatprep.subr.mxu0 0.0
    %1309 = vmatpush1.msra.mxu0 0.0
    %1310 = vmatprep.subr.mxu0 0.0
    %1311 = vmatpush1.msra.mxu0 0.0
    %1312 = vmatprep.subr.mxu0 0.0
    %1313 = vmatpush1.msra.mxu0 0.0
    %1314 = vmatprep.subr.mxu0 0.0
    %1315 = vmatpush1.msra.mxu0 0.0
    %1316 = vmatprep.subr.mxu0 0.0
    %1317 = vmatpush1.msra.mxu0 0.0
    %1318 = vmatprep.subr.mxu0 0.0
    %1319 = vmatpush1.msra.mxu0 0.0
    %1320 = vmatprep.subr.mxu0 0.0
    %1321 = vmatpush1.msra.mxu0 0.0
    %1322 = vmatprep.subr.mxu0 0.0
    %1323 = vmatpush1.msra.mxu0 0.0
    %1324 = vmatprep.subr.mxu0 0.0
    %1325 = vmatpush1.msra.mxu0 0.0
    %1326 = vmatprep.subr.mxu0 0.0
    %1327 = vmatpush1.msra.mxu0 0.0
    %1328 = vmatprep.subr.mxu0 0.0
    %1329 = vmatpush1.msra.mxu0 0.0
    %1330 = vmatprep.subr.mxu0 0.0
    %1331 = vmatpush1.msra.mxu0 0.0
    %1332 = vmatprep.mubr.f32.mxu0 0.0
    %v1333 = vand.u32 %v1226, 4294901760
    %v1334 = vsub.f32 %v1226, %v1333
    %v1335 = vand.u32 %v1334, 4294901760
    %v1336 = vsub.f32 %v1334, %v1335
    %v1337 = vand.u32 %v1336, 4294901760
    %1338 = vmatmul.mubr.f32.gmra.mrb[0].mxu0 %v1337
    %v1339 = vpop.f32.mrb[0].mxu0
    %v1340 = vadd.f32 %v1250, %v1339
    %v1341 = vpop.f32.mrb[0].mxu0
    %1342 = vdwg.mxu0
    %1343 = vmatprep.subr.mxu0 0.0
    %v1344 = vand.u32 %v1228, 4294901760
    %v1345 = vsub.f32 %v1228, %v1344
    %v1346 = vand.u32 %v1345, 4294901760
    %v1347 = vsub.f32 %v1345, %v1346
    %v1348 = vand.u32 %v1347, 4294901760
    %1349 = vmatpush1.msra.mxu0 %v1348
    %1350 = vmatprep.subr.mxu0 0.0
    %v1351 = vand.u32 %v1229, 4294901760
    %v1352 = vsub.f32 %v1229, %v1351
    %v1353 = vand.u32 %v1352, 4294901760
    %v1354 = vsub.f32 %v1352, %v1353
    %v1355 = vand.u32 %v1354, 4294901760
    %1356 = vmatpush1.msra.mxu0 %v1355
    %1357 = vmatprep.subr.mxu0 0.0
    %v1358 = vand.u32 %v1230, 4294901760
    %v1359 = vsub.f32 %v1230, %v1358
    %v1360 = vand.u32 %v1359, 4294901760
    %v1361 = vsub.f32 %v1359, %v1360
    %v1362 = vand.u32 %v1361, 4294901760
    %1363 = vmatpush1.msra.mxu0 %v1362
    %1364 = vmatprep.subr.mxu0 0.0
    %v1365 = vand.u32 %v1231, 4294901760
    %v1366 = vsub.f32 %v1231, %v1365
    %v1367 = vand.u32 %v1366, 4294901760
    %v1368 = vsub.f32 %v1366, %v1367
    %v1369 = vand.u32 %v1368, 4294901760
    %1370 = vmatpush1.msra.mxu0 %v1369
    %1371 = vmatprep.subr.mxu0 0.0
    %v1372 = vand.u32 %v1232, 4294901760
    %v1373 = vsub.f32 %v1232, %v1372
    %v1374 = vand.u32 %v1373, 4294901760
    %v1375 = vsub.f32 %v1373, %v1374
    %v1376 = vand.u32 %v1375, 4294901760
    %1377 = vmatpush1.msra.mxu0 %v1376
    %1378 = vmatprep.subr.mxu0 0.0
    %v1379 = vand.u32 %v1233, 4294901760
    %v1380 = vsub.f32 %v1233, %v1379
    %v1381 = vand.u32 %v1380, 4294901760
    %v1382 = vsub.f32 %v1380, %v1381
    %v1383 = vand.u32 %v1382, 4294901760
    %1384 = vmatpush1.msra.mxu0 %v1383
    %1385 = vmatprep.subr.mxu0 0.0
    %v1386 = vand.u32 %v1234, 4294901760
    %v1387 = vsub.f32 %v1234, %v1386
    %v1388 = vand.u32 %v1387, 4294901760
    %v1389 = vsub.f32 %v1387, %v1388
    %v1390 = vand.u32 %v1389, 4294901760
    %1391 = vmatpush1.msra.mxu0 %v1390
    %1392 = vmatprep.subr.mxu0 0.0
    %v1393 = vand.u32 %v1235, 4294901760
    %v1394 = vsub.f32 %v1235, %v1393
    %v1395 = vand.u32 %v1394, 4294901760
    %v1396 = vsub.f32 %v1394, %v1395
    %v1397 = vand.u32 %v1396, 4294901760
    %1398 = vmatpush1.msra.mxu0 %v1397
    %1399 = vmatprep.subr.mxu0 0.0
    %v1400 = vand.u32 %v1236, 4294901760
    %v1401 = vsub.f32 %v1236, %v1400
    %v1402 = vand.u32 %v1401, 4294901760
    %v1403 = vsub.f32 %v1401, %v1402
    %v1404 = vand.u32 %v1403, 4294901760
    %1405 = vmatpush1.msra.mxu0 %v1404
    %1406 = vmatprep.subr.mxu0 0.0
    %v1407 = vand.u32 %v1237, 4294901760
    %v1408 = vsub.f32 %v1237, %v1407
    %v1409 = vand.u32 %v1408, 4294901760
    %v1410 = vsub.f32 %v1408, %v1409
    %v1411 = vand.u32 %v1410, 4294901760
    %1412 = vmatpush1.msra.mxu0 %v1411
    %1413 = vmatprep.subr.mxu0 0.0
    %v1414 = vand.u32 %v1238, 4294901760
    %v1415 = vsub.f32 %v1238, %v1414
    %v1416 = vand.u32 %v1415, 4294901760
    %v1417 = vsub.f32 %v1415, %v1416
    %v1418 = vand.u32 %v1417, 4294901760
    %1419 = vmatpush1.msra.mxu0 %v1418
    %1420 = vmatprep.subr.mxu0 0.0
    %v1421 = vand.u32 %v1239, 4294901760
    %v1422 = vsub.f32 %v1239, %v1421
    %v1423 = vand.u32 %v1422, 4294901760
    %v1424 = vsub.f32 %v1422, %v1423
    %v1425 = vand.u32 %v1424, 4294901760
    %1426 = vmatpush1.msra.mxu0 %v1425
    %1427 = vmatprep.subr.mxu0 0.0
    %v1428 = vand.u32 %v1240, 4294901760
    %v1429 = vsub.f32 %v1240, %v1428
    %v1430 = vand.u32 %v1429, 4294901760
    %v1431 = vsub.f32 %v1429, %v1430
    %v1432 = vand.u32 %v1431, 4294901760
    %1433 = vmatpush1.msra.mxu0 %v1432
    %1434 = vmatprep.subr.mxu0 0.0
    %v1435 = vand.u32 %v1241, 4294901760
    %v1436 = vsub.f32 %v1241, %v1435
    %v1437 = vand.u32 %v1436, 4294901760
    %v1438 = vsub.f32 %v1436, %v1437
    %v1439 = vand.u32 %v1438, 4294901760
    %1440 = vmatpush1.msra.mxu0 %v1439
    %1441 = vmatprep.subr.mxu0 0.0
    %v1442 = vand.u32 %v1242, 4294901760
    %v1443 = vsub.f32 %v1242, %v1442
    %v1444 = vand.u32 %v1443, 4294901760
    %v1445 = vsub.f32 %v1443, %v1444
    %v1446 = vand.u32 %v1445, 4294901760
    %1447 = vmatpush1.msra.mxu0 %v1446
    %1448 = vmatprep.subr.mxu0 0.0
    %v1449 = vand.u32 %v1243, 4294901760
    %v1450 = vsub.f32 %v1243, %v1449
    %v1451 = vand.u32 %v1450, 4294901760
    %v1452 = vsub.f32 %v1450, %v1451
    %v1453 = vand.u32 %v1452, 4294901760
    %1454 = vmatpush1.msra.mxu0 %v1453
    %1455 = vmatprep.subr.mxu0 0.0
    %1456 = vmatpush1.msra.mxu0 0.0
    %1457 = vmatprep.subr.mxu0 0.0
    %1458 = vmatpush1.msra.mxu0 0.0
    %1459 = vmatprep.subr.mxu0 0.0
    %1460 = vmatpush1.msra.mxu0 0.0
    %1461 = vmatprep.subr.mxu0 0.0
    %1462 = vmatpush1.msra.mxu0 0.0
    %1463 = vmatprep.subr.mxu0 0.0
    %1464 = vmatpush1.msra.mxu0 0.0
    %1465 = vmatprep.subr.mxu0 0.0
    %1466 = vmatpush1.msra.mxu0 0.0
    %1467 = vmatprep.subr.mxu0 0.0
    %1468 = vmatpush1.msra.mxu0 0.0
    %1469 = vmatprep.subr.mxu0 0.0
    %1470 = vmatpush1.msra.mxu0 0.0
    %1471 = vmatprep.subr.mxu0 0.0
    %1472 = vmatpush1.msra.mxu0 0.0
    %1473 = vmatprep.subr.mxu0 0.0
    %1474 = vmatpush1.msra.mxu0 0.0
    %1475 = vmatprep.subr.mxu0 0.0
    %1476 = vmatpush1.msra.mxu0 0.0
    %1477 = vmatprep.subr.mxu0 0.0
    %1478 = vmatpush1.msra.mxu0 0.0
    %1479 = vmatprep.subr.mxu0 0.0
    %1480 = vmatpush1.msra.mxu0 0.0
    %1481 = vmatprep.subr.mxu0 0.0
    %1482 = vmatpush1.msra.mxu0 0.0
    %1483 = vmatprep.subr.mxu0 0.0
    %1484 = vmatpush1.msra.mxu0 0.0
    %1485 = vmatprep.subr.mxu0 0.0
    %1486 = vmatpush1.msra.mxu0 0.0
    %1487 = vmatprep.mubr.f32.mxu0 0.0
    %v1488 = vand.u32 %v1226, 4294901760
    %1489 = vmatmul.mubr.f32.gmra.mrb[0].mxu0 %v1488
    %v1490 = vpop.f32.mrb[0].mxu0
    %v1491 = vadd.f32 %v1340, %v1490
    %v1492 = vpop.f32.mrb[0].mxu0
    %1493 = vdwg.mxu0
    %1494 = vmatprep.subr.mxu0 0.0
    %v1495 = vand.u32 %v1228, 4294901760
    %v1496 = vsub.f32 %v1228, %v1495
    %1497 = vmatpush1.msra.mxu0 %v1496
    %1498 = vmatprep.subr.mxu0 0.0
    %v1499 = vand.u32 %v1229, 4294901760
    %v1500 = vsub.f32 %v1229, %v1499
    %1501 = vmatpush1.msra.mxu0 %v1500
    %1502 = vmatprep.subr.mxu0 0.0
    %v1503 = vand.u32 %v1230, 4294901760
    %v1504 = vsub.f32 %v1230, %v1503
    %1505 = vmatpush1.msra.mxu0 %v1504
    %1506 = vmatprep.subr.mxu0 0.0
    %v1507 = vand.u32 %v1231, 4294901760
    %v1508 = vsub.f32 %v1231, %v1507
    %1509 = vmatpush1.msra.mxu0 %v1508
    %1510 = vmatprep.subr.mxu0 0.0
    %v1511 = vand.u32 %v1232, 4294901760
    %v1512 = vsub.f32 %v1232, %v1511
    %1513 = vmatpush1.msra.mxu0 %v1512
    %1514 = vmatprep.subr.mxu0 0.0
    %v1515 = vand.u32 %v1233, 4294901760
    %v1516 = vsub.f32 %v1233, %v1515
    %1517 = vmatpush1.msra.mxu0 %v1516
    %1518 = vmatprep.subr.mxu0 0.0
    %v1519 = vand.u32 %v1234, 4294901760
    %v1520 = vsub.f32 %v1234, %v1519
    %1521 = vmatpush1.msra.mxu0 %v1520
    %1522 = vmatprep.subr.mxu0 0.0
    %v1523 = vand.u32 %v1235, 4294901760
    %v1524 = vsub.f32 %v1235, %v1523
    %1525 = vmatpush1.msra.mxu0 %v1524
    %1526 = vmatprep.subr.mxu0 0.0
    %v1527 = vand.u32 %v1236, 4294901760
    %v1528 = vsub.f32 %v1236, %v1527
    %1529 = vmatpush1.msra.mxu0 %v1528
    %1530 = vmatprep.subr.mxu0 0.0
    %v1531 = vand.u32 %v1237, 4294901760
    %v1532 = vsub.f32 %v1237, %v1531
    %1533 = vmatpush1.msra.mxu0 %v1532
    %1534 = vmatprep.subr.mxu0 0.0
    %v1535 = vand.u32 %v1238, 4294901760
    %v1536 = vsub.f32 %v1238, %v1535
    %1537 = vmatpush1.msra.mxu0 %v1536
    %1538 = vmatprep.subr.mxu0 0.0
    %v1539 = vand.u32 %v1239, 4294901760
    %v1540 = vsub.f32 %v1239, %v1539
    %1541 = vmatpush1.msra.mxu0 %v1540
    %1542 = vmatprep.subr.mxu0 0.0
    %v1543 = vand.u32 %v1240, 4294901760
    %v1544 = vsub.f32 %v1240, %v1543
    %1545 = vmatpush1.msra.mxu0 %v1544
    %1546 = vmatprep.subr.mxu0 0.0
    %v1547 = vand.u32 %v1241, 4294901760
    %v1548 = vsub.f32 %v1241, %v1547
    %1549 = vmatpush1.msra.mxu0 %v1548
    %1550 = vmatprep.subr.mxu0 0.0
    %v1551 = vand.u32 %v1242, 4294901760
    %v1552 = vsub.f32 %v1242, %v1551
    %1553 = vmatpush1.msra.mxu0 %v1552
    %1554 = vmatprep.subr.mxu0 0.0
    %v1555 = vand.u32 %v1243, 4294901760
    %v1556 = vsub.f32 %v1243, %v1555
    %1557 = vmatpush1.msra.mxu0 %v1556
    %1558 = vmatprep.subr.mxu0 0.0
    %1559 = vmatpush1.msra.mxu0 0.0
    %1560 = vmatprep.subr.mxu0 0.0
    %1561 = vmatpush1.msra.mxu0 0.0
    %1562 = vmatprep.subr.mxu0 0.0
    %1563 = vmatpush1.msra.mxu0 0.0
    %1564 = vmatprep.subr.mxu0 0.0
    %1565 = vmatpush1.msra.mxu0 0.0
    %1566 = vmatprep.subr.mxu0 0.0
    %1567 = vmatpush1.msra.mxu0 0.0
    %1568 = vmatprep.subr.mxu0 0.0
    %1569 = vmatpush1.msra.mxu0 0.0
    %1570 = vmatprep.subr.mxu0 0.0
    %1571 = vmatpush1.msra.mxu0 0.0
    %1572 = vmatprep.subr.mxu0 0.0
    %1573 = vmatpush1.msra.mxu0 0.0
    %1574 = vmatprep.subr.mxu0 0.0
    %1575 = vmatpush1.msra.mxu0 0.0
    %1576 = vmatprep.subr.mxu0 0.0
    %1577 = vmatpush1.msra.mxu0 0.0
    %1578 = vmatprep.subr.mxu0 0.0
    %1579 = vmatpush1.msra.mxu0 0.0
    %1580 = vmatprep.subr.mxu0 0.0
    %1581 = vmatpush1.msra.mxu0 0.0
    %1582 = vmatprep.subr.mxu0 0.0
    %1583 = vmatpush1.msra.mxu0 0.0
    %1584 = vmatprep.subr.mxu0 0.0
    %1585 = vmatpush1.msra.mxu0 0.0
    %1586 = vmatprep.subr.mxu0 0.0
    %1587 = vmatpush1.msra.mxu0 0.0
    %1588 = vmatprep.subr.mxu0 0.0
    %1589 = vmatpush1.msra.mxu0 0.0
    %1590 = vmatprep.mubr.f32.mxu0 0.0
    %v1591 = vand.u32 %v1226, 4294901760
    %v1592 = vsub.f32 %v1226, %v1591
    %1593 = vmatmul.mubr.f32.gmra.mrb[0].mxu0 %v1592
    %v1594 = vpop.f32.mrb[0].mxu0
    %v1595 = vadd.f32 %v1491, %v1594
    %v1596 = vpop.f32.mrb[0].mxu0
    %1597 = vdwg.mxu0
    %1598 = vmatprep.subr.mxu0 0.0
    %v1599 = vand.u32 %v1228, 4294901760
    %1600 = vmatpush1.msra.mxu0 %v1599
    %1601 = vmatprep.subr.mxu0 0.0
    %v1602 = vand.u32 %v1229, 4294901760
    %1603 = vmatpush1.msra.mxu0 %v1602
    %1604 = vmatprep.subr.mxu0 0.0
    %v1605 = vand.u32 %v1230, 4294901760
    %1606 = vmatpush1.msra.mxu0 %v1605
    %1607 = vmatprep.subr.mxu0 0.0
    %v1608 = vand.u32 %v1231, 4294901760
    %1609 = vmatpush1.msra.mxu0 %v1608
    %1610 = vmatprep.subr.mxu0 0.0
    %v1611 = vand.u32 %v1232, 4294901760
    %1612 = vmatpush1.msra.mxu0 %v1611
    %1613 = vmatprep.subr.mxu0 0.0
    %v1614 = vand.u32 %v1233, 4294901760
    %1615 = vmatpush1.msra.mxu0 %v1614
    %1616 = vmatprep.subr.mxu0 0.0
    %v1617 = vand.u32 %v1234, 4294901760
    %1618 = vmatpush1.msra.mxu0 %v1617
    %1619 = vmatprep.subr.mxu0 0.0
    %v1620 = vand.u32 %v1235, 4294901760
    %1621 = vmatpush1.msra.mxu0 %v1620
    %1622 = vmatprep.subr.mxu0 0.0
    %v1623 = vand.u32 %v1236, 4294901760
    %1624 = vmatpush1.msra.mxu0 %v1623
    %1625 = vmatprep.subr.mxu0 0.0
    %v1626 = vand.u32 %v1237, 4294901760
    %1627 = vmatpush1.msra.mxu0 %v1626
    %1628 = vmatprep.subr.mxu0 0.0
    %v1629 = vand.u32 %v1238, 4294901760
    %1630 = vmatpush1.msra.mxu0 %v1629
    %1631 = vmatprep.subr.mxu0 0.0
    %v1632 = vand.u32 %v1239, 4294901760
    %1633 = vmatpush1.msra.mxu0 %v1632
    %1634 = vmatprep.subr.mxu0 0.0
    %v1635 = vand.u32 %v1240, 4294901760
    %1636 = vmatpush1.msra.mxu0 %v1635
    %1637 = vmatprep.subr.mxu0 0.0
    %v1638 = vand.u32 %v1241, 4294901760
    %1639 = vmatpush1.msra.mxu0 %v1638
    %1640 = vmatprep.subr.mxu0 0.0
    %v1641 = vand.u32 %v1242, 4294901760
    %1642 = vmatpush1.msra.mxu0 %v1641
    %1643 = vmatprep.subr.mxu0 0.0
    %v1644 = vand.u32 %v1243, 4294901760
    %1645 = vmatpush1.msra.mxu0 %v1644
    %1646 = vmatprep.subr.mxu0 0.0
    %1647 = vmatpush1.msra.mxu0 0.0
    %1648 = vmatprep.subr.mxu0 0.0
    %1649 = vmatpush1.msra.mxu0 0.0
    %1650 = vmatprep.subr.mxu0 0.0
    %1651 = vmatpush1.msra.mxu0 0.0
    %1652 = vmatprep.subr.mxu0 0.0
    %1653 = vmatpush1.msra.mxu0 0.0
    %1654 = vmatprep.subr.mxu0 0.0
    %1655 = vmatpush1.msra.mxu0 0.0
    %1656 = vmatprep.subr.mxu0 0.0
    %1657 = vmatpush1.msra.mxu0 0.0
    %1658 = vmatprep.subr.mxu0 0.0
    %1659 = vmatpush1.msra.mxu0 0.0
    %1660 = vmatprep.subr.mxu0 0.0
    %1661 = vmatpush1.msra.mxu0 0.0
    %1662 = vmatprep.subr.mxu0 0.0
    %1663 = vmatpush1.msra.mxu0 0.0
    %1664 = vmatprep.subr.mxu0 0.0
    %1665 = vmatpush1.msra.mxu0 0.0
    %1666 = vmatprep.subr.mxu0 0.0
    %1667 = vmatpush1.msra.mxu0 0.0
    %1668 = vmatprep.subr.mxu0 0.0
    %1669 = vmatpush1.msra.mxu0 0.0
    %1670 = vmatprep.subr.mxu0 0.0
    %1671 = vmatpush1.msra.mxu0 0.0
    %1672 = vmatprep.subr.mxu0 0.0
    %1673 = vmatpush1.msra.mxu0 0.0
    %1674 = vmatprep.subr.mxu0 0.0
    %1675 = vmatpush1.msra.mxu0 0.0
    %1676 = vmatprep.subr.mxu0 0.0
    %1677 = vmatpush1.msra.mxu0 0.0
    %1678 = vmatprep.mubr.f32.mxu0 0.0
    %v1679 = vand.u32 %v1226, 4294901760
    %v1680 = vsub.f32 %v1226, %v1679
    %v1681 = vand.u32 %v1680, 4294901760
    %1682 = vmatmul.mubr.f32.gmra.mrb[0].mxu0 %v1681
    %v1683 = vpop.f32.mrb[0].mxu0
    %v1684 = vadd.f32 %v1595, %v1683
    %v1685 = vpop.f32.mrb[0].mxu0
    %1686 = vdwg.mxu0
    %1687 = vmatprep.subr.mxu0 0.0
    %v1688 = vand.u32 %v1228, 4294901760
    %v1689 = vsub.f32 %v1228, %v1688
    %v1690 = vand.u32 %v1689, 4294901760
    %1691 = vmatpush1.msra.mxu0 %v1690
    %1692 = vmatprep.subr.mxu0 0.0
    %v1693 = vand.u32 %v1229, 4294901760
    %v1694 = vsub.f32 %v1229, %v1693
    %v1695 = vand.u32 %v1694, 4294901760
    %1696 = vmatpush1.msra.mxu0 %v1695
    %1697 = vmatprep.subr.mxu0 0.0
    %v1698 = vand.u32 %v1230, 4294901760
    %v1699 = vsub.f32 %v1230, %v1698
    %v1700 = vand.u32 %v1699, 4294901760
    %1701 = vmatpush1.msra.mxu0 %v1700
    %1702 = vmatprep.subr.mxu0 0.0
    %v1703 = vand.u32 %v1231, 4294901760
    %v1704 = vsub.f32 %v1231, %v1703
    %v1705 = vand.u32 %v1704, 4294901760
    %1706 = vmatpush1.msra.mxu0 %v1705
    %1707 = vmatprep.subr.mxu0 0.0
    %v1708 = vand.u32 %v1232, 4294901760
    %v1709 = vsub.f32 %v1232, %v1708
    %v1710 = vand.u32 %v1709, 4294901760
    %1711 = vmatpush1.msra.mxu0 %v1710
    %1712 = vmatprep.subr.mxu0 0.0
    %v1713 = vand.u32 %v1233, 4294901760
    %v1714 = vsub.f32 %v1233, %v1713
    %v1715 = vand.u32 %v1714, 4294901760
    %1716 = vmatpush1.msra.mxu0 %v1715
    %1717 = vmatprep.subr.mxu0 0.0
    %v1718 = vand.u32 %v1234, 4294901760
    %v1719 = vsub.f32 %v1234, %v1718
    %v1720 = vand.u32 %v1719, 4294901760
    %1721 = vmatpush1.msra.mxu0 %v1720
    %1722 = vmatprep.subr.mxu0 0.0
    %v1723 = vand.u32 %v1235, 4294901760
    %v1724 = vsub.f32 %v1235, %v1723
    %v1725 = vand.u32 %v1724, 4294901760
    %1726 = vmatpush1.msra.mxu0 %v1725
    %1727 = vmatprep.subr.mxu0 0.0
    %v1728 = vand.u32 %v1236, 4294901760
    %v1729 = vsub.f32 %v1236, %v1728
    %v1730 = vand.u32 %v1729, 4294901760
    %1731 = vmatpush1.msra.mxu0 %v1730
    %1732 = vmatprep.subr.mxu0 0.0
    %v1733 = vand.u32 %v1237, 4294901760
    %v1734 = vsub.f32 %v1237, %v1733
    %v1735 = vand.u32 %v1734, 4294901760
    %1736 = vmatpush1.msra.mxu0 %v1735
    %1737 = vmatprep.subr.mxu0 0.0
    %v1738 = vand.u32 %v1238, 4294901760
    %v1739 = vsub.f32 %v1238, %v1738
    %v1740 = vand.u32 %v1739, 4294901760
    %1741 = vmatpush1.msra.mxu0 %v1740
    %1742 = vmatprep.subr.mxu0 0.0
    %v1743 = vand.u32 %v1239, 4294901760
    %v1744 = vsub.f32 %v1239, %v1743
    %v1745 = vand.u32 %v1744, 4294901760
    %1746 = vmatpush1.msra.mxu0 %v1745
    %1747 = vmatprep.subr.mxu0 0.0
    %v1748 = vand.u32 %v1240, 4294901760
    %v1749 = vsub.f32 %v1240, %v1748
    %v1750 = vand.u32 %v1749, 4294901760
    %1751 = vmatpush1.msra.mxu0 %v1750
    %1752 = vmatprep.subr.mxu0 0.0
    %v1753 = vand.u32 %v1241, 4294901760
    %v1754 = vsub.f32 %v1241, %v1753
    %v1755 = vand.u32 %v1754, 4294901760
    %1756 = vmatpush1.msra.mxu0 %v1755
    %1757 = vmatprep.subr.mxu0 0.0
    %v1758 = vand.u32 %v1242, 4294901760
    %v1759 = vsub.f32 %v1242, %v1758
    %v1760 = vand.u32 %v1759, 4294901760
    %1761 = vmatpush1.msra.mxu0 %v1760
    %1762 = vmatprep.subr.mxu0 0.0
    %v1763 = vand.u32 %v1243, 4294901760
    %v1764 = vsub.f32 %v1243, %v1763
    %v1765 = vand.u32 %v1764, 4294901760
    %1766 = vmatpush1.msra.mxu0 %v1765
    %1767 = vmatprep.subr.mxu0 0.0
    %1768 = vmatpush1.msra.mxu0 0.0
    %1769 = vmatprep.subr.mxu0 0.0
    %1770 = vmatpush1.msra.mxu0 0.0
    %1771 = vmatprep.subr.mxu0 0.0
    %1772 = vmatpush1.msra.mxu0 0.0
    %1773 = vmatprep.subr.mxu0 0.0
    %1774 = vmatpush1.msra.mxu0 0.0
    %1775 = vmatprep.subr.mxu0 0.0
    %1776 = vmatpush1.msra.mxu0 0.0
    %1777 = vmatprep.subr.mxu0 0.0
    %1778 = vmatpush1.msra.mxu0 0.0
    %1779 = vmatprep.subr.mxu0 0.0
    %1780 = vmatpush1.msra.mxu0 0.0
    %1781 = vmatprep.subr.mxu0 0.0
    %1782 = vmatpush1.msra.mxu0 0.0
    %1783 = vmatprep.subr.mxu0 0.0
    %1784 = vmatpush1.msra.mxu0 0.0
    %1785 = vmatprep.subr.mxu0 0.0
    %1786 = vmatpush1.msra.mxu0 0.0
    %1787 = vmatprep.subr.mxu0 0.0
    %1788 = vmatpush1.msra.mxu0 0.0
    %1789 = vmatprep.subr.mxu0 0.0
    %1790 = vmatpush1.msra.mxu0 0.0
    %1791 = vmatprep.subr.mxu0 0.0
    %1792 = vmatpush1.msra.mxu0 0.0
    %1793 = vmatprep.subr.mxu0 0.0
    %1794 = vmatpush1.msra.mxu0 0.0
    %1795 = vmatprep.subr.mxu0 0.0
    %1796 = vmatpush1.msra.mxu0 0.0
    %1797 = vmatprep.subr.mxu0 0.0
    %1798 = vmatpush1.msra.mxu0 0.0
    %1799 = vmatprep.mubr.f32.mxu0 0.0
    %v1800 = vand.u32 %v1226, 4294901760
    %1801 = vmatmul.mubr.f32.gmra.mrb[0].mxu0 %v1800
    %v1802 = vpop.f32.mrb[0].mxu0
    %v1803 = vadd.f32 %v1684, %v1802
    %v1804 = vpop.f32.mrb[0].mxu0
    %1805 = vdwg.mxu0
    %1806 = vmatprep.subr.mxu0 0.0
    %v1807 = vand.u32 %v1228, 4294901760
    %1808 = vmatpush1.msra.mxu0 %v1807
    %1809 = vmatprep.subr.mxu0 0.0
    %v1810 = vand.u32 %v1229, 4294901760
    %1811 = vmatpush1.msra.mxu0 %v1810
    %1812 = vmatprep.subr.mxu0 0.0
    %v1813 = vand.u32 %v1230, 4294901760
    %1814 = vmatpush1.msra.mxu0 %v1813
    %1815 = vmatprep.subr.mxu0 0.0
    %v1816 = vand.u32 %v1231, 4294901760
    %1817 = vmatpush1.msra.mxu0 %v1816
    %1818 = vmatprep.subr.mxu0 0.0
    %v1819 = vand.u32 %v1232, 4294901760
    %1820 = vmatpush1.msra.mxu0 %v1819
    %1821 = vmatprep.subr.mxu0 0.0
    %v1822 = vand.u32 %v1233, 4294901760
    %1823 = vmatpush1.msra.mxu0 %v1822
    %1824 = vmatprep.subr.mxu0 0.0
    %v1825 = vand.u32 %v1234, 4294901760
    %1826 = vmatpush1.msra.mxu0 %v1825
    %1827 = vmatprep.subr.mxu0 0.0
    %v1828 = vand.u32 %v1235, 4294901760
    %1829 = vmatpush1.msra.mxu0 %v1828
    %1830 = vmatprep.subr.mxu0 0.0
    %v1831 = vand.u32 %v1236, 4294901760
    %1832 = vmatpush1.msra.mxu0 %v1831
    %1833 = vmatprep.subr.mxu0 0.0
    %v1834 = vand.u32 %v1237, 4294901760
    %1835 = vmatpush1.msra.mxu0 %v1834
    %1836 = vmatprep.subr.mxu0 0.0
    %v1837 = vand.u32 %v1238, 4294901760
    %1838 = vmatpush1.msra.mxu0 %v1837
    %1839 = vmatprep.subr.mxu0 0.0
    %v1840 = vand.u32 %v1239, 4294901760
    %1841 = vmatpush1.msra.mxu0 %v1840
    %1842 = vmatprep.subr.mxu0 0.0
    %v1843 = vand.u32 %v1240, 4294901760
    %1844 = vmatpush1.msra.mxu0 %v1843
    %1845 = vmatprep.subr.mxu0 0.0
    %v1846 = vand.u32 %v1241, 4294901760
    %1847 = vmatpush1.msra.mxu0 %v1846
    %1848 = vmatprep.subr.mxu0 0.0
    %v1849 = vand.u32 %v1242, 4294901760
    %1850 = vmatpush1.msra.mxu0 %v1849
    %1851 = vmatprep.subr.mxu0 0.0
    %v1852 = vand.u32 %v1243, 4294901760
    %1853 = vmatpush1.msra.mxu0 %v1852
    %1854 = vmatprep.subr.mxu0 0.0
    %1855 = vmatpush1.msra.mxu0 0.0
    %1856 = vmatprep.subr.mxu0 0.0
    %1857 = vmatpush1.msra.mxu0 0.0
    %1858 = vmatprep.subr.mxu0 0.0
    %1859 = vmatpush1.msra.mxu0 0.0
    %1860 = vmatprep.subr.mxu0 0.0
    %1861 = vmatpush1.msra.mxu0 0.0
    %1862 = vmatprep.subr.mxu0 0.0
    %1863 = vmatpush1.msra.mxu0 0.0
    %1864 = vmatprep.subr.mxu0 0.0
    %1865 = vmatpush1.msra.mxu0 0.0
    %1866 = vmatprep.subr.mxu0 0.0
    %1867 = vmatpush1.msra.mxu0 0.0
    %1868 = vmatprep.subr.mxu0 0.0
    %1869 = vmatpush1.msra.mxu0 0.0
    %1870 = vmatprep.subr.mxu0 0.0
    %1871 = vmatpush1.msra.mxu0 0.0
    %1872 = vmatprep.subr.mxu0 0.0
    %1873 = vmatpush1.msra.mxu0 0.0
    %1874 = vmatprep.subr.mxu0 0.0
    %1875 = vmatpush1.msra.mxu0 0.0
    %1876 = vmatprep.subr.mxu0 0.0
    %1877 = vmatpush1.msra.mxu0 0.0
    %1878 = vmatprep.subr.mxu0 0.0
    %1879 = vmatpush1.msra.mxu0 0.0
    %1880 = vmatprep.subr.mxu0 0.0
    %1881 = vmatpush1.msra.mxu0 0.0
    %1882 = vmatprep.subr.mxu0 0.0
    %1883 = vmatpush1.msra.mxu0 0.0
    %1884 = vmatprep.subr.mxu0 0.0
    %1885 = vmatpush1.msra.mxu0 0.0
    %1886 = vmatprep.mubr.f32.mxu0 0.0
    %v1887 = vand.u32 %v1226, 4294901760
    %1888 = vmatmul.mubr.f32.gmra.mrb[0].mxu0 %v1887
    %v1889 = vpop.f32.mrb[0].mxu0
    %v1890 = vadd.f32 %v1803, %v1889
    %v1891 = vpop.f32.mrb[0].mxu0
    %1892 = vdwg.mxu0
    %v1893 = vlaneseq
    %v1894 = vand.u32 %v1893, 127
    %vm1895 = vcmp.lt.s32.totalorder %v1894, 32
    %v1896 = vsel %vm1895, %v1890, -inf
    %1897 = vmax.xlane.f32.xlu0 %v1896
    %v1898 = vpop.xlane.xlu0 %1897
    %v1899 = vsub.f32 %v1896, %v1898
    %v1900 = vmul.f32 %v1899, 1.442695
    %v1901 = vpow.pop %v1900
    %1902 = vadd.xlane.f32.xlu0 %v1901
    %v1903 = vpop.xlane.xlu0 %1902
    %v1904 = vrcp.pop %v1903
    %v1905 = vmul.f32 %v1901, %v1904
    %1906 = vst [vmem:[#allocation8] sm:$0xff] %v1905
    // Predicated region
    $region34: #{task_specific_network_forward.1} parent=1 // pred_check
      _
    $region35: #{task_specific_network_forward.1} parent=1 // pred_check_branch
      %1908 = sbr.rel (0) target = $region37
    $region36: #{task_specific_network_forward.1} parent=1 // pred_region
      %s1910 = ssub.s32 128, 128
      %1911 = vsyncadd [#allocation4], %s1910
      %s1913 = sshll.u32 [#allocation8], 4
      %s1914 = int_to_ptr.vmem [resolvable:$true] %s1913
      %1916 = dma.vmem_to_hbm [thread:$0]  %s1914, 128, %s5, [#allocation4]
    $region37: #{task_specific_network_forward.1} parent=1 // pred_fallthru
      _
    // Predicated region
    $region38: #{task_specific_network_forward.1} parent=1 // pred_check
      _
    $region39: #{task_specific_network_forward.1} parent=1 // pred_check_branch
      %1918 = sbr.rel (0) target = $region41
    $region40: #{task_specific_network_forward.1} parent=1 // pred_region
      %1919 = dma.done [#allocation4], 128
    $region41: #{task_specific_network_forward.1} parent=1 // pred_fallthru
      _
    %1920 = vsyncpa [#allocation3], 1
    %1921 = vsyncpa [#allocation6], 1
    %1922 = vsyncpa [#allocation4], 1

</llo_original>
